<compile_context>
chip_gen: v7x
topology: tpu7x:2x2x1
jax: 0.10.0
libtpu: 0.0.40
codegen_flags: <defaults>
</compile_context>

<pallas_src>
import functools

import jax
import jax.numpy as jnp
from jax.experimental import pallas as pl
from jax.experimental.pallas import tpu as pltpu


def _round_up(x, m):
    return (x + m - 1) // m * m


def _conv_bn_silu_kernel(x_ref, w_ref, bias_ref, out_ref, *,
                         TH, W, C1, TC2, KH, KW, FUSE_K):
    """One (batch, H-tile, C2-tile) grid step.

    x_ref:    (TH+KH-1, Wp, C1)    bf16  overlapping H tile ('same' W pad, halo rows incl.)
    w_ref:    (KH*KW*C1, TC2)      bf16  conv weights (BN scale folded in), kh-major
    bias_ref: (1, TC2)             f32   folded BN bias
    out_ref:  (TH, W, TC2)         bf16
    """
    THE = TH + KH - 1
    M = TH * W
    x = x_ref[...]                                        # (THE, Wp, C1) bf16

    if FUSE_K:
        # im2col: build (M, KH*KW*C1) patch, single MXU matmul.
        pieces = [[None] * KW for _ in range(KH)]
        for kw in range(KW):
            # one sublane-unaligned W shift per kw, reshaped once, reused by all kh
            xs = x[:, kw:kw + W, :].reshape(THE * W, C1)
            for kh in range(KH):
                pieces[kh][kw] = xs[kh * W:kh * W + M]    # aligned row slice
        if KH * KW == 1:
            patch = pieces[0][0]
        else:
            patch = jnp.concatenate(
                [pieces[kh][kw] for kh in range(KH) for kw in range(KW)],
                axis=-1)                                  # (M, KH*KW*C1) bf16
        acc = jnp.dot(patch, w_ref[...], preferred_element_type=jnp.float32)
    else:
        # Large C1: K=C1 already feeds the MXU well; accumulate per tap.
        acc = jnp.zeros((M, TC2), dtype=jnp.float32)
        for kw in range(KW):
            xs = x[:, kw:kw + W, :].reshape(THE * W, C1)
            for kh in range(KH):
                k0 = (kh * KW + kw) * C1
                acc += jnp.dot(xs[kh * W:kh * W + M], w_ref[k0:k0 + C1, :],
                               preferred_element_type=jnp.float32)

    # Folded-BN bias + SiLU epilogue in fp32 (exp -> EUP slot, approx recip -> cheap).
    y = acc + bias_ref[0]
    y = y * pl.reciprocal(1.0 + jnp.exp(-y), approx=True)
    out_ref[...] = y.reshape(TH, W, TC2).astype(out_ref.dtype)


def conv_bn_silu(x_nchw, weight, gamma, beta, running_mean, running_var,
                 eps=1e-5):
    """Forward of ultralytics Conv: SiLU(BN(conv(x))), stride=1, groups=1, d=1."""
    N, C1, H, W = x_nchw.shape
    C2, C1w, KH, KW = weight.shape
    assert C1w == C1, "groups != 1 not supported"
    if KH % 2 == 0 or KW % 2 == 0:
        # autopad 'same' equivalence only holds for odd kernel sizes.
        raise NotImplementedError("only odd kernel sizes are supported")
    ph, pw = KH // 2, KW // 2
    Wp = W + 2 * pw

    # ---- TPU-generation knobs ----------------------------------------------
    try:
        kind = jax.devices()[0].device_kind.lower()
    except Exception:  # pragma: no cover
        kind = ""
    is_v5 = "v5" in kind
    try:
        info = pltpu.get_tpu_info()
        vmem_cap = int(getattr(info, "vmem_capacity_bytes") * 3 // 4)
    except Exception:  # pragma: no cover
        vmem_cap = 48 * 2 ** 20

    # ---- tile sizes ---------------------------------------------------------
    m_target = 256 if is_v5 else 512            # rows per MXU matmul
    TH = max(1, min(H, max(1, m_target // W)))
    nH = pl.cdiv(H, TH)
    THE = TH + KH - 1                           # tile rows incl. halo
    C2p = _round_up(C2, 128)                    # lane-dense output channels
    if is_v5:
        TC2 = 128                               # 128-wide MXU: 256 only costs VMEM
    else:
        TC2 = 256 if C2p % 256 == 0 else 128
    nC2 = C2p // TC2
    FUSE_K = C1 < 128                           # fold taps into contraction dim

    # ---- inputs: NCHW -> NHWC bf16, 'same' pad, overlapping H tiles ---------
    # TODO(synk): in a full network keep activations NHWC bf16 between layers so
    # the transpose / gather / final transpose HBM round trips disappear.
    x = jnp.transpose(x_nchw, (0, 2, 3, 1)).astype(jnp.bfloat16)
    pad_hi = nH * TH + (KH - 1) - H - ph        # >= ph >= 0
    x_pad = jnp.pad(x, ((0, 0), (ph, pad_hi), (pw, pw), (0, 0)))
    x_tiles = jnp.stack([x_pad[:, i * TH:i * TH + THE] for i in range(nH)],
                        axis=1)                 # (N, nH, THE, Wp, C1)

    # ---- weights: fold BN scale, (C2,C1,KH,KW) -> (KH*KW*C1, C2p) bf16 ------
    inv_std = 1.0 / jnp.sqrt(running_var + eps)
    scale = (gamma * inv_std).astype(jnp.float32)                 # (C2,)
    bias = (beta - running_mean * gamma * inv_std).astype(jnp.float32)
    w = jnp.transpose(weight, (2, 3, 1, 0)).astype(jnp.float32) * scale
    w = jnp.pad(w, ((0, 0), (0, 0), (0, 0), (0, C2p - C2)))
    w = w.reshape(KH * KW * C1, C2p).astype(jnp.bfloat16)
    bias_p = jnp.pad(bias, (0, C2p - C2)).reshape(1, C2p)

    # ---- grid order: reuse whichever operand would be re-read the most ------
    x_bytes = x_tiles.size * 2
    w_bytes = w.size * 2
    cost_act_outer = x_bytes + (w_bytes if nC2 == 1 else w_bytes * N * nH)
    cost_w_outer = w_bytes + x_bytes * nC2
    act_outer = cost_act_outer <= cost_w_outer

    if act_outer:
        grid = (N, nH, nC2)
        x_map = lambda n, i, j: (n, i, 0, 0, 0)
        w_map = lambda n, i, j: (0, j)
        b_map = lambda n, i, j: (0, j)
        o_map = lambda n, i, j: (n, i, 0, j)
    else:
        grid = (nC2, N, nH)
        x_map = lambda j, n, i: (n, i, 0, 0, 0)
        w_map = lambda j, n, i: (0, j)
        b_map = lambda j, n, i: (0, j)
        o_map = lambda j, n, i: (n, i, 0, j)

    kernel = functools.partial(_conv_bn_silu_kernel, TH=TH, W=W, C1=C1,
                               TC2=TC2, KH=KH, KW=KW, FUSE_K=FUSE_K)

    # ---- VMEM budget + cost estimate ---------------------------------------
    blk_bytes = (THE * Wp * C1 * 2            # x tile (bf16)
                 + KH * KW * C1 * TC2 * 2     # weights (bf16)
                 + TC2 * 4                    # bias
                 + TH * W * TC2 * 2)          # output tile (bf16)
    interm_bytes = (TH * W * KH * KW * C1 * 2     # fused patch
                    + THE * W * C1 * 2            # per-kw shifted slice
                    + 2 * TH * W * TC2 * 4)       # fp32 acc + epilogue temps
    vmem_limit = int(min(vmem_cap,
                         max(16 * 2 ** 20, 2 * (2 * blk_bytes + interm_bytes))))

    out_bytes = N * nH * TH * W * C2p * 2
    cost = pl.CostEstimate(
        flops=2 * N * nH * TH * W * KH * KW * C1 * C2p,
        transcendentals=N * nH * TH * W * C2p,
        bytes_accessed=min(cost_act_outer, cost_w_outer) + out_bytes
                       + bias_p.size * 4)

    # TODO(synk): for C2 <= 32 pack several W columns into the lane dim of the
    # output tile instead of padding channels to 128 (cuts write amplification).
    out_full = pl.pallas_call(
        kernel,
        out_shape=jax.ShapeDtypeStruct((N, nH * TH, W, C2p), jnp.bfloat16),
        grid_spec=pltpu.PrefetchScalarGridSpec(
            num_scalar_prefetch=0,
            grid=grid,
            in_specs=[
                pl.BlockSpec((None, None, THE, Wp, C1), x_map),
                pl.BlockSpec((KH * KW * C1, TC2), w_map),
                pl.BlockSpec((1, TC2), b_map),
            ],
            out_specs=pl.BlockSpec((None, TH, W, TC2), o_map),
        ),
        compiler_params=pltpu.CompilerParams(
            dimension_semantics=("parallel", "parallel", "parallel"),
            vmem_limit_bytes=vmem_limit),
        cost_estimate=cost,
    )(x_tiles, w, bias_p)

    # Drop H / C2 padding, NHWC -> NCHW to match the PyTorch interface.
    out = out_full[:, :H, :, :C2]
    return jnp.transpose(out, (0, 3, 1, 2)).astype(x_nchw.dtype)


def _reference(x_nchw, weight, gamma, beta, running_mean, running_var,
               eps=1e-5):
    """Pure-JAX f32 reference (lax conv) for correctness check."""
    y = jax.lax.conv_general_dilated(
        x_nchw, weight, window_strides=(1, 1), padding="SAME",
        dimension_numbers=("NCHW", "OIHW", "NCHW"))
    inv_std = 1.0 / jnp.sqrt(running_var + eps)
    scale = (gamma * inv_std).reshape(1, -1, 1, 1)
    bias = (beta - running_mean * gamma * inv_std).reshape(1, -1, 1, 1)
    y = y * scale + bias
    return y * jax.nn.sigmoid(y)


if __name__ == "__main__":
    key = jax.random.PRNGKey(0)
    k_x, k_w, k_g, k_b, k_m, k_v = jax.random.split(key, 6)

    # Conv(c1=4, c2=8, k=3, s=1) -> autopad gives p=1 ('same').
    N, C1, C2, H, W, K = 2, 4, 8, 16, 16, 3

    x = jax.random.normal(k_x, (N, C1, H, W), dtype=jnp.float32)
    weight = 0.1 * jax.random.normal(k_w, (C2, C1, K, K), dtype=jnp.float32)
    gamma = 1.0 + 0.1 * jax.random.normal(k_g, (C2,), dtype=jnp.float32)
    beta = 0.1 * jax.random.normal(k_b, (C2,), dtype=jnp.float32)
    running_mean = 0.05 * jax.random.normal(k_m, (C2,), dtype=jnp.float32)
    running_var = 1.0 + 0.1 * jax.random.uniform(k_v, (C2,), dtype=jnp.float32)

    out = conv_bn_silu(x, weight, gamma, beta, running_mean, running_var)
    out = jax.block_until_ready(out)

    ref = _reference(x, weight, gamma, beta, running_mean, running_var)
    assert out.shape == (N, C2, H, W)
    # bf16 MXU operands + bf16 output (fp32 accumulation) -> relaxed tolerance.
    assert jnp.allclose(out, ref, atol=4e-2, rtol=4e-2), "mismatch vs reference"

    print("KERNEL_OK")
</pallas_src>

<mosaic_0001>
module attributes {stable_mosaic.version = 11 : i64} {
  func.func @_conv_bn_silu_kernel(%arg0: i32, %arg1: i32, %arg2: i32, %arg3: memref<1x1x18x18x4xbf16, #tpu.memory_space<vmem>>, %arg4: memref<36x128xbf16, #tpu.memory_space<vmem>>, %arg5: memref<1x128xf32, #tpu.memory_space<vmem>>, %arg6: memref<1x16x16x128xbf16, #tpu.memory_space<vmem>>) attributes {dimension_semantics = [#tpu.dimension_semantics<parallel>, #tpu.dimension_semantics<parallel>, #tpu.dimension_semantics<parallel>], iteration_bounds = array<i64: 2, 1, 1>, scalar_prefetch = 0 : i64, scratch_operands = 0 : i64, tpu.core_type = #tpu.core_type<tc>, window_params = [{transform_indices = @transform_0, window_bounds = array<i64: 1, 1, 18, 18, 4>}, {transform_indices = @transform_1, window_bounds = array<i64: 36, 128>}, {transform_indices = @transform_2, window_bounds = array<i64: 1, 128>}, {transform_indices = @transform_3, window_bounds = array<i64: 1, 16, 16, 128>}]} {
    %c0 = arith.constant 0 : index
    %c0_0 = arith.constant 0 : index
    %c0_1 = arith.constant 0 : index
    %c0_2 = arith.constant 0 : index
    %c0_3 = arith.constant 0 : index
    %0 = vector.load %arg3[%c0, %c0_0, %c0_1, %c0_2, %c0_3] : memref<1x1x18x18x4xbf16, #tpu.memory_space<vmem>>, vector<1x1x18x18x4xbf16>
    %1 = vector.shape_cast %0 : vector<1x1x18x18x4xbf16> to vector<18x18x4xbf16>
    %2 = vector.extract_strided_slice %1 {offsets = [0, 0, 0], sizes = [18, 16, 4], strides = [1, 1, 1]} : vector<18x18x4xbf16> to vector<18x16x4xbf16>
    %3 = vector.shape_cast %2 : vector<18x16x4xbf16> to vector<288x4xbf16>
    %4 = vector.extract_strided_slice %3 {offsets = [0, 0], sizes = [256, 4], strides = [1, 1]} : vector<288x4xbf16> to vector<256x4xbf16>
    %5 = vector.extract_strided_slice %3 {offsets = [16, 0], sizes = [256, 4], strides = [1, 1]} : vector<288x4xbf16> to vector<256x4xbf16>
    %6 = vector.extract_strided_slice %3 {offsets = [32, 0], sizes = [256, 4], strides = [1, 1]} : vector<288x4xbf16> to vector<256x4xbf16>
    %7 = vector.extract_strided_slice %1 {offsets = [0, 1, 0], sizes = [18, 16, 4], strides = [1, 1, 1]} : vector<18x18x4xbf16> to vector<18x16x4xbf16>
    %8 = vector.shape_cast %7 : vector<18x16x4xbf16> to vector<288x4xbf16>
    %9 = vector.extract_strided_slice %8 {offsets = [0, 0], sizes = [256, 4], strides = [1, 1]} : vector<288x4xbf16> to vector<256x4xbf16>
    %10 = vector.extract_strided_slice %8 {offsets = [16, 0], sizes = [256, 4], strides = [1, 1]} : vector<288x4xbf16> to vector<256x4xbf16>
    %11 = vector.extract_strided_slice %8 {offsets = [32, 0], sizes = [256, 4], strides = [1, 1]} : vector<288x4xbf16> to vector<256x4xbf16>
    %12 = vector.extract_strided_slice %1 {offsets = [0, 2, 0], sizes = [18, 16, 4], strides = [1, 1, 1]} : vector<18x18x4xbf16> to vector<18x16x4xbf16>
    %13 = vector.shape_cast %12 : vector<18x16x4xbf16> to vector<288x4xbf16>
    %14 = vector.extract_strided_slice %13 {offsets = [0, 0], sizes = [256, 4], strides = [1, 1]} : vector<288x4xbf16> to vector<256x4xbf16>
    %15 = vector.extract_strided_slice %13 {offsets = [16, 0], sizes = [256, 4], strides = [1, 1]} : vector<288x4xbf16> to vector<256x4xbf16>
    %16 = vector.extract_strided_slice %13 {offsets = [32, 0], sizes = [256, 4], strides = [1, 1]} : vector<288x4xbf16> to vector<256x4xbf16>
    %17 = tpu.concatenate %4, %9, %14, %5, %10, %15, %6, %11, %16 in 1 : vector<256x4xbf16>, vector<256x4xbf16>, vector<256x4xbf16>, vector<256x4xbf16>, vector<256x4xbf16>, vector<256x4xbf16>, vector<256x4xbf16>, vector<256x4xbf16>, vector<256x4xbf16> -> vector<256x36xbf16>
    %c0_4 = arith.constant 0 : index
    %c0_5 = arith.constant 0 : index
    %18 = vector.load %arg4[%c0_4, %c0_5] : memref<36x128xbf16, #tpu.memory_space<vmem>>, vector<36x128xbf16>
    %cst = arith.constant dense<0.000000e+00> : vector<256x128xf32>
    %19 = tpu.matmul %17, %18, %cst {dimension_numbers = #tpu.dot_dimension_numbers<[1], [0], [0], [1], [0, 0, 1, 1], [], []>} : vector<256x36xbf16>, vector<36x128xbf16>, vector<256x128xf32> -> vector<256x128xf32>
    %c0_6 = arith.constant 0 : index
    %c0_7 = arith.constant 0 : index
    %20 = vector.load %arg5[%c0_6, %c0_7] : memref<1x128xf32, #tpu.memory_space<vmem>>, vector<1x128xf32>
    %21 = vector.shape_cast %20 : vector<1x128xf32> to vector<128xf32>
    %22 = vector.shape_cast %21 : vector<128xf32> to vector<1x128xf32>
    %23 = vector.broadcast %22 : vector<1x128xf32> to vector<256x128xf32>
    %24 = arith.addf %19, %23 : vector<256x128xf32>
    %cst_8 = arith.constant 0.000000e+00 : f32
    %25 = vector.broadcast %cst_8 : f32 to vector<256x128xf32>
    %26 = arith.subf %25, %24 : vector<256x128xf32>
    %27 = math.exp %26 : vector<256x128xf32>
    %cst_9 = arith.constant 1.000000e+00 : f32
    %28 = vector.broadcast %cst_9 : f32 to vector<256x128xf32>
    %29 = arith.addf %28, %27 : vector<256x128xf32>
    %30 = tpu.reciprocal %29 {approx = true} : vector<256x128xf32> -> vector<256x128xf32>
    %31 = arith.mulf %24, %30 : vector<256x128xf32>
    %32 = vector.shape_cast %31 : vector<256x128xf32> to vector<16x16x128xf32>
    %33 = arith.truncf %32 : vector<16x16x128xf32> to vector<16x16x128xbf16>
    %c0_10 = arith.constant 0 : index
    %c0_11 = arith.constant 0 : index
    %c0_12 = arith.constant 0 : index
    %c0_13 = arith.constant 0 : index
    %34 = vector.load %arg6[%c0_10, %c0_11, %c0_12, %c0_13] : memref<1x16x16x128xbf16, #tpu.memory_space<vmem>>, vector<1x16x16x128xbf16>
    %35 = vector.shape_cast %34 : vector<1x16x16x128xbf16> to vector<16x16x128xbf16>
    %36 = vector.shape_cast %33 : vector<16x16x128xbf16> to vector<1x16x16x128xbf16>
    tpu.vector_store %arg6[%c0_10, %c0_11, %c0_12, %c0_13], %36 {strides = array<i32>} : memref<1x16x16x128xbf16, #tpu.memory_space<vmem>>, vector<1x16x16x128xbf16>,
    return
  }
  func.func @transform_0(%arg0: i32, %arg1: i32, %arg2: i32) -> (i32, i32, i32, i32, i32) {
    %c0_i32 = arith.constant 0 : i32
    %c0_i32_0 = arith.constant 0 : i32
    %c0_i32_1 = arith.constant 0 : i32
    %c0_i32_2 = arith.constant 0 : i32
    return %arg0, %arg1, %c0_i32, %c0_i32_0, %c0_i32_1 : i32, i32, i32, i32, i32
  }
  func.func @transform_1(%arg0: i32, %arg1: i32, %arg2: i32) -> (i32, i32) {
    %c0_i32 = arith.constant 0 : i32
    %c0_i32_0 = arith.constant 0 : i32
    return %c0_i32, %arg2 : i32, i32
  }
  func.func @transform_2(%arg0: i32, %arg1: i32, %arg2: i32) -> (i32, i32) {
    %c0_i32 = arith.constant 0 : i32
    %c0_i32_0 = arith.constant 0 : i32
    return %c0_i32, %arg2 : i32, i32
  }
  func.func @transform_3(%arg0: i32, %arg1: i32, %arg2: i32) -> (i32, i32, i32, i32) {
    %c0_i32 = arith.constant 0 : i32
    %c0_i32_0 = arith.constant 0 : i32
    return %arg0, %arg1, %c0_i32, %arg2 : i32, i32, i32, i32
  }
}

</mosaic_0001>

<llo_original>
// kernel: tpu_custom_call.1
$region0: #{tpu_custom_call.1}
  #allocation0 [shape = 'u32[]', space=smem, size = 0x4, offset = 0x4, fixed_abs, tag = 'smem constant byte address 0x4 - core index']
  #allocation1 [shape = 'u32[144,128]{1,0:T(1,128)}', space=vmem, size = 0x12000, scoped, tag = 'internal scratch']
  %s0 = inlined_call_operand.vmem [shape: bf16[2,1,18,18,4], index: 0, kind: input, shape index: {}]
  %s1 = inlined_call_operand.vmem [shape: bf16[36,128], index: 1, kind: input, shape index: {}]
  %s2 = inlined_call_operand.vmem [shape: f32[1,128], index: 2, kind: input, shape index: {}]
  %s3 = inlined_call_operand.hbm [shape: bf16[2,16,16,128], index: 3, kind: output, shape index: {}]
  %s4 = sld [smem:[#allocation0]]
  $region45: #{tpu_custom_call.1} parent=0
    _
  %s6 = ssub.s32 1, %s4
  %s7 = scalar_select 0, %s6, %s4
  $region1: #{tpu_custom_call.1} parent=0
    #allocation2 [shape = 'u8[131072]{0}', space=vmem, size = 0x20000, scoped, tag = 'output window, operand 0']
    #allocation3 [shape = 's32[2]{0}', space=sflag, size = 0x8, scoped, tag = 'scoped memory for tpu_custom_call.1']
    %8 = vsyncpa [#allocation3], 0
    %s9 = scalar_lea.sflag [#allocation3], 1
    %10 = vsyncpa %s9, 0
    loop: start=0, step=1, limit=4
    $region2: #{tpu_custom_call.1} parent=1 // loop_pre_header
      _
    $region3: #{tpu_custom_call.1} parent=1 // loop_header
      %s12 = sphi 0, %s16
      %p13 = scmp.ge.s32.totalorder %s12, 4
      %s19 = sphi 0, %s38
      %s20 = sphi 0, %s34
      %s21 = sphi 0, %s30
      %s22 = sphi 0, %s19
      %s23 = sphi 0, %s20
      %s24 = sphi 0, %s21
      %s25 = sphi 0, %s22
      %s26 = sphi 0, %s23
      %s27 = sphi 0, %s24
      %s43 = sphi 0, %s45
      %s46 = sphi 0, %s43
      %s47 = sphi 0, %s46
      %s63 = sphi 0, %s47
      %s69 = sphi 0, %s71
      %s72 = sphi 0, %s69
      %s73 = sphi 0, %s72
      %s89 = sphi 0, %s73
      %s95 = sphi 0, %s97
      %s98 = sphi 0, %s95
      %s99 = sphi 0, %s98
      %s115 = sphi 0, %s99
      %s125 = sphi 0, %s127
      %s128 = sphi 0, %s125
      %s129 = sphi 0, %s128
      %s145 = sphi 0, %s129
    $region4: #{tpu_custom_call.1} parent=1 // loop_header_branch
      %15 = sbr.rel (%p13) target = $region8
    $region5: #{tpu_custom_call.1} parent=1 // loop_body
      %s17 = ssub.s32 %s12, 1
      %s18 = ssub.s32 %s12, 2
      %s28 = sadd.s32 1, %s21
      %p29 = scmp.ge.s32.totalorder %s28, 1
      %s30 = scalar_select %p29, 0, %s28
      %s31 = sadd.s32 1, %s20
      %s32 = scalar_select %p29, %s31, %s20
      %p33 = scmp.ge.s32.totalorder %s32, 1
      %s34 = scalar_select %p33, 0, %s32
      %s35 = sadd.s32 1, %s19
      %s36 = scalar_select %p33, %s35, %s19
      %p37 = scmp.ge.s32.totalorder %s36, 2
      %s38 = scalar_select %p37, 0, %s36
      %s39 = ssub.s32 %s19, %s38
      %s40 = ssub.s32 %s20, %s34
      %s41 = sor.u32 %s39, %s40
      %p42 = scmp.eq.s32.totalorder %s41, 0
      %s44 = sadd.s32 %s43, 1
      %s45 = scalar_select %p42, %s43, %s44
      %p48 = pneg %p42
      %p49 = scmp.eq.s32.totalorder %s12, 1
      %p50 = por %p48, %p49
      %p51 = scmp.ne.s32.totalorder %s43, %s46
      %p52 = scmp.eq.s32.totalorder %s12, 0
      %p53 = por %p51, %p52
      %p54 = scmp.ne.s32.totalorder %s43, %s46
      %p55 = scmp.eq.s32.totalorder %s17, 1
      %p56 = por %p54, %p55
      %p57 = scmp.ne.s32.totalorder %s46, %s47
      %p58 = scmp.eq.s32.totalorder %s17, 0
      %p59 = por %p57, %p58
      %p60 = scmp.ne.s32.totalorder %s46, %s47
      %p61 = scmp.eq.s32.totalorder %s18, 1
      %p62 = por %p60, %p61
      %p64 = scmp.ne.s32.totalorder %s47, %s63
      %p65 = scmp.eq.s32.totalorder %s18, 0
      %p66 = por %p64, %p65
      %s67 = ssub.s32 %s21, %s30
      %p68 = scmp.eq.s32.totalorder %s67, 0
      %s70 = sadd.s32 %s69, 1
      %s71 = scalar_select %p68, %s69, %s70
      %p74 = pneg %p68
      %p75 = scmp.eq.s32.totalorder %s12, 1
      %p76 = por %p74, %p75
      %p77 = scmp.ne.s32.totalorder %s69, %s72
      %p78 = scmp.eq.s32.totalorder %s12, 0
      %p79 = por %p77, %p78
      %p80 = scmp.ne.s32.totalorder %s69, %s72
      %p81 = scmp.eq.s32.totalorder %s17, 1
      %p82 = por %p80, %p81
      %p83 = scmp.ne.s32.totalorder %s72, %s73
      %p84 = scmp.eq.s32.totalorder %s17, 0
      %p85 = por %p83, %p84
      %p86 = scmp.ne.s32.totalorder %s72, %s73
      %p87 = scmp.eq.s32.totalorder %s18, 1
      %p88 = por %p86, %p87
      %p90 = scmp.ne.s32.totalorder %s73, %s89
      %p91 = scmp.eq.s32.totalorder %s18, 0
      %p92 = por %p90, %p91
      %s93 = ssub.s32 %s21, %s30
      %p94 = scmp.eq.s32.totalorder %s93, 0
      %s96 = sadd.s32 %s95, 1
      %s97 = scalar_select %p94, %s95, %s96
      %p100 = pneg %p94
      %p101 = scmp.eq.s32.totalorder %s12, 1
      %p102 = por %p100, %p101
      %p103 = scmp.ne.s32.totalorder %s95, %s98
      %p104 = scmp.eq.s32.totalorder %s12, 0
      %p105 = por %p103, %p104
      %p106 = scmp.ne.s32.totalorder %s95, %s98
      %p107 = scmp.eq.s32.totalorder %s17, 1
      %p108 = por %p106, %p107
      %p109 = scmp.ne.s32.totalorder %s98, %s99
      %p110 = scmp.eq.s32.totalorder %s17, 0
      %p111 = por %p109, %p110
      %p112 = scmp.ne.s32.totalorder %s98, %s99
      %p113 = scmp.eq.s32.totalorder %s18, 1
      %p114 = por %p112, %p113
      %p116 = scmp.ne.s32.totalorder %s99, %s115
      %p117 = scmp.eq.s32.totalorder %s18, 0
      %p118 = por %p116, %p117
      %s119 = ssub.s32 %s19, %s38
      %s120 = ssub.s32 %s20, %s34
      %s121 = sor.u32 %s119, %s120
      %s122 = ssub.s32 %s21, %s30
      %s123 = sor.u32 %s121, %s122
      %p124 = scmp.eq.s32.totalorder %s123, 0
      %s126 = sadd.s32 %s125, 1
      %s127 = scalar_select %p124, %s125, %s126
      %p130 = pneg %p124
      %p131 = scmp.eq.s32.totalorder %s12, 1
      %p132 = por %p130, %p131
      %p133 = scmp.ne.s32.totalorder %s125, %s128
      %p134 = scmp.eq.s32.totalorder %s12, 0
      %p135 = por %p133, %p134
      %p136 = scmp.ne.s32.totalorder %s125, %s128
      %p137 = scmp.eq.s32.totalorder %s17, 1
      %p138 = por %p136, %p137
      %p139 = scmp.ne.s32.totalorder %s128, %s129
      %p140 = scmp.eq.s32.totalorder %s17, 0
      %p141 = por %p139, %p140
      %p142 = scmp.ne.s32.totalorder %s128, %s129
      %p143 = scmp.eq.s32.totalorder %s18, 1
      %p144 = por %p142, %p143
      %p146 = scmp.ne.s32.totalorder %s129, %s145
      %p147 = scmp.eq.s32.totalorder %s18, 0
      %p148 = por %p146, %p147
      %p149 = scmp.le.s32.totalorder 1, %s12
      %p150 = scmp.lt.s32.totalorder %s12, 3
      %p151 = pnand %p149, %p150
      %p152 = pneg %p151
      // Predicated region
      $region9: #{tpu_custom_call.1} parent=5 // pred_check
        _
      $region10: #{tpu_custom_call.1} parent=5 // pred_check_branch
        %154 = sbr.rel (%p151) target = $region12
      $region11: #{tpu_custom_call.1} parent=5 // pred_region
        %s155 = ssub.s32 %s12, 1
        // Predicated region
        $region13: #{tpu_custom_call.1} parent=11 // pred_check
          %p156 = pneg %p85
        $region14: #{tpu_custom_call.1} parent=11 // pred_check_branch
          %158 = sbr.rel (%p156) target = $region16
        $region15: #{tpu_custom_call.1} parent=11 // pred_region
          %p159 = scmp.lt.s32.totalorder %s24, 0
          %s160 = scalar_select %p159, %s24, 0
          %s161 = smul.addr %s160, 4
          %s162 = scalar_lea.vmem %s1, %s161
        $region16: #{tpu_custom_call.1} parent=11 // pred_fallthru
          _
        // Predicated region
        $region17: #{tpu_custom_call.1} parent=11 // pred_check
          %p163 = pneg %p111
        $region18: #{tpu_custom_call.1} parent=11 // pred_check_branch
          %165 = sbr.rel (%p163) target = $region20
        $region19: #{tpu_custom_call.1} parent=11 // pred_region
          %p166 = scmp.lt.s32.totalorder %s24, 0
          %s167 = scalar_select %p166, %s24, 0
          %s168 = scalar_lea.vmem %s2, %s167
        $region20: #{tpu_custom_call.1} parent=11 // pred_fallthru
          _
      $region12: #{tpu_custom_call.1} parent=5 // pred_fallthru
        _
      %p169 = scmp.lt.s32.totalorder %s12, 2
      // Predicated region
      $region21: #{tpu_custom_call.1} parent=5 // pred_check
        %p170 = pneg %p169
      $region22: #{tpu_custom_call.1} parent=5 // pred_check_branch
        %172 = sbr.rel (%p170) target = $region24
      $region23: #{tpu_custom_call.1} parent=5 // pred_region
        // Predicated region
        $region25: #{tpu_custom_call.1} parent=23 // pred_check
          %p173 = pneg %p53
        $region26: #{tpu_custom_call.1} parent=23 // pred_check_branch
          %175 = sbr.rel (%p173) target = $region28
        $region27: #{tpu_custom_call.1} parent=23 // pred_region
          %p176 = scmp.lt.s32.totalorder %s19, 1
          %s177 = scalar_select %p176, %s19, 1
          %p178 = scmp.lt.s32.totalorder %s20, 0
          %s179 = scalar_select %p178, %s20, 0
          %s180 = smul.addr %s179, 54
          %s181 = smul.addr %s177, 54
          %s182 = sadd.s32 %s180, %s181
          %s183 = smul.addr %s182, 4
          %s184 = scalar_lea.vmem %s0, %s183
        $region28: #{tpu_custom_call.1} parent=23 // pred_fallthru
          _
      $region24: #{tpu_custom_call.1} parent=5 // pred_fallthru
        _
      %p185 = scmp.le.s32.totalorder 1, %s12
      %p186 = scmp.lt.s32.totalorder %s12, 3
      %p187 = pnand %p185, %p186
      %p188 = pneg %p187
      // Predicated region
      $region29: #{tpu_custom_call.1} parent=5 // pred_check
        _
      $region30: #{tpu_custom_call.1} parent=5 // pred_check_branch
        %190 = sbr.rel (%p187) target = $region32
      $region31: #{tpu_custom_call.1} parent=5 // pred_region
        %s191 = ssub.s32 %s12, 1
        %p192 = scmp.lt.s32.totalorder %s22, 1
        %s193 = scalar_select %p192, %s22, 1
        %p194 = scmp.lt.s32.totalorder %s23, 0
        %s195 = scalar_select %p194, %s23, 0
        %s196 = smul.addr %s195, 54
        %s197 = smul.addr %s193, 54
        %s198 = sadd.s32 %s196, %s197
        %s199 = smul.addr %s198, 4
        %s200 = scalar_lea.vmem %s0, %s199
        %p201 = pneg %p59
        %p202 = pneg %p56
        %p203 = scmp.lt.s32.totalorder %s24, 0
        %s204 = scalar_select %p203, %s24, 0
        %s205 = smul.addr %s204, 4
        %s206 = scalar_lea.vmem %s1, %s205
        %p207 = pneg %p85
        %p208 = pneg %p82
        %p209 = scmp.lt.s32.totalorder %s24, 0
        %s210 = scalar_select %p209, %s24, 0
        %s211 = scalar_lea.vmem %s2, %s210
        %p212 = pneg %p111
        %p213 = pneg %p108
        %p214 = pneg %p141
        %p215 = pneg %p138
        %s216 = sand.u32 %s128, 1
        %s217 = scalar_lea.sflag [#allocation3], %s216
        %s218 = sand.u32 %s128, 1
        %s219 = smul.addr %s218, 128
        %s220 = scalar_lea.vmem [#allocation2], %s219
        %p221 = scmp.lt.s32.totalorder %s22, 1
        %s222 = scalar_select %p221, %s22, 1
        %p223 = scmp.lt.s32.totalorder %s23, 0
        %s224 = scalar_select %p223, %s23, 0
        %s225 = smul.addr %s224, 54
        %s226 = smul.addr %s222, 54
        %s227 = sadd.s32 %s225, %s226
        %s228 = smul.addr %s227, 4
        %s229 = scalar_lea.vmem %s0, %s228
        %p230 = scmp.lt.s32.totalorder %s24, 0
        %s231 = scalar_select %p230, %s24, 0
        %s232 = smul.addr %s231, 4
        %s233 = scalar_lea.vmem %s1, %s232
        %p234 = scmp.lt.s32.totalorder %s24, 0
        %s235 = scalar_select %p234, %s24, 0
        %s236 = scalar_lea.vmem %s2, %s235
        %s237 = smul.u32 16, %s23
        %v239 = vld [vmem:[%s229] sm:$0xf]
        %v240 = vld [vmem:[%s229 + $0x4] sm:$0xf]
        %v241 = vld [vmem:[%s229 + $0x8] sm:$0x1]
        %v242 = vld [vmem:[%s229 + $0xc] sm:$0xf]
        %v243 = vld [vmem:[%s229 + $0x10] sm:$0xf]
        %v244 = vld [vmem:[%s229 + $0x14] sm:$0x1]
        %v245 = vld [vmem:[%s229 + $0x18] sm:$0xf]
        %v246 = vld [vmem:[%s229 + $0x1c] sm:$0xf]
        %v247 = vld [vmem:[%s229 + $0x20] sm:$0x1]
        %v248 = vld [vmem:[%s229 + $0x24] sm:$0xf]
        %v249 = vld [vmem:[%s229 + $0x28] sm:$0xf]
        %v250 = vld [vmem:[%s229 + $0x2c] sm:$0x1]
        %v251 = vld [vmem:[%s229 + $0x30] sm:$0xf]
        %v252 = vld [vmem:[%s229 + $0x34] sm:$0xf]
        %v253 = vld [vmem:[%s229 + $0x38] sm:$0x1]
        %v254 = vld [vmem:[%s229 + $0x3c] sm:$0xf]
        %v255 = vld [vmem:[%s229 + $0x40] sm:$0xf]
        %v256 = vld [vmem:[%s229 + $0x44] sm:$0x1]
        %v257 = vld [vmem:[%s229 + $0x48] sm:$0xf]
        %v258 = vld [vmem:[%s229 + $0x4c] sm:$0xf]
        %v259 = vld [vmem:[%s229 + $0x50] sm:$0x1]
        %v260 = vld [vmem:[%s229 + $0x54] sm:$0xf]
        %v261 = vld [vmem:[%s229 + $0x58] sm:$0xf]
        %v262 = vld [vmem:[%s229 + $0x5c] sm:$0x1]
        %v263 = vld [vmem:[%s229 + $0x60] sm:$0xf]
        %v264 = vld [vmem:[%s229 + $0x64] sm:$0xf]
        %v265 = vld [vmem:[%s229 + $0x68] sm:$0x1]
        %v266 = vld [vmem:[%s229 + $0x6c] sm:$0xf]
        %v267 = vld [vmem:[%s229 + $0x70] sm:$0xf]
        %v268 = vld [vmem:[%s229 + $0x74] sm:$0x1]
        %v269 = vld [vmem:[%s229 + $0x78] sm:$0xf]
        %v270 = vld [vmem:[%s229 + $0x7c] sm:$0xf]
        %v271 = vld [vmem:[%s229 + $0x80] sm:$0x1]
        %v272 = vld [vmem:[%s229 + $0x84] sm:$0xf]
        %v273 = vld [vmem:[%s229 + $0x88] sm:$0xf]
        %v274 = vld [vmem:[%s229 + $0x8c] sm:$0x1]
        %v275 = vld [vmem:[%s229 + $0x90] sm:$0xf]
        %v276 = vld [vmem:[%s229 + $0x94] sm:$0xf]
        %v277 = vld [vmem:[%s229 + $0x98] sm:$0x1]
        %v278 = vld [vmem:[%s229 + $0x9c] sm:$0xf]
        %v279 = vld [vmem:[%s229 + $0xa0] sm:$0xf]
        %v280 = vld [vmem:[%s229 + $0xa4] sm:$0x1]
        %v281 = vld [vmem:[%s229 + $0xa8] sm:$0xf]
        %v282 = vld [vmem:[%s229 + $0xac] sm:$0xf]
        %v283 = vld [vmem:[%s229 + $0xb0] sm:$0x1]
        %v284 = vld [vmem:[%s229 + $0xb4] sm:$0xf]
        %v285 = vld [vmem:[%s229 + $0xb8] sm:$0xf]
        %v286 = vld [vmem:[%s229 + $0xbc] sm:$0x1]
        %v287 = vld [vmem:[%s229 + $0xc0] sm:$0xf]
        %v288 = vld [vmem:[%s229 + $0xc4] sm:$0xf]
        %v289 = vld [vmem:[%s229 + $0xc8] sm:$0x1]
        %v290 = vld [vmem:[%s229 + $0xcc] sm:$0xf]
        %v291 = vld [vmem:[%s229 + $0xd0] sm:$0xf]
        %v292 = vld [vmem:[%s229 + $0xd4] sm:$0x1]
        %vm293 = vsmask.f32 3328
        %vm294 = vsmask.f32 7440
        %vm295 = vmor %vm293, %vm294
        %v297 = vshrl.u32 %v239, 16
        %v299 = vrot.slane %v297, 4
        %v300 = vshll.u32 %v239, 16
        %v302 = vrot.slane %v300, 5
        %v303 = vor.u32 %v299, %v302
        %v304 = vrot.slane %v303, 4
        %v306 = vshll.u32 %v240, 16
        %v308 = vrot.slane %v306, 5
        %v309 = vsel %vm295, %v304, %v308
        %v310 = vshrl.u32 %v240, 16
        %v312 = vrot.slane %v310, 4
        %v313 = vor.u32 %v312, %v308
        %v314 = vrot.slane %v313, 4
        %v316 = vshll.u32 %v241, 16
        %v318 = vrot.slane %v316, 5
        %v319 = vsel %vm295, %v314, %v318
        %v321 = vshrl.u32 %v242, 16
        %v323 = vrot.slane %v321, 4
        %v324 = vshll.u32 %v242, 16
        %v326 = vrot.slane %v324, 5
        %v327 = vor.u32 %v323, %v326
        %v328 = vrot.slane %v327, 4
        %v330 = vshll.u32 %v243, 16
        %v332 = vrot.slane %v330, 5
        %v333 = vsel %vm295, %v328, %v332
        %v334 = vshrl.u32 %v243, 16
        %v336 = vrot.slane %v334, 4
        %v337 = vor.u32 %v336, %v332
        %v338 = vrot.slane %v337, 4
        %v340 = vshll.u32 %v244, 16
        %v342 = vrot.slane %v340, 5
        %v343 = vsel %vm295, %v338, %v342
        %v345 = vshrl.u32 %v245, 16
        %v347 = vrot.slane %v345, 4
        %v348 = vshll.u32 %v245, 16
        %v350 = vrot.slane %v348, 5
        %v351 = vor.u32 %v347, %v350
        %v352 = vrot.slane %v351, 4
        %v354 = vshll.u32 %v246, 16
        %v356 = vrot.slane %v354, 5
        %v357 = vsel %vm295, %v352, %v356
        %v358 = vshrl.u32 %v246, 16
        %v360 = vrot.slane %v358, 4
        %v361 = vor.u32 %v360, %v356
        %v362 = vrot.slane %v361, 4
        %v364 = vshll.u32 %v247, 16
        %v366 = vrot.slane %v364, 5
        %v367 = vsel %vm295, %v362, %v366
        %v369 = vshrl.u32 %v248, 16
        %v371 = vrot.slane %v369, 4
        %v372 = vshll.u32 %v248, 16
        %v374 = vrot.slane %v372, 5
        %v375 = vor.u32 %v371, %v374
        %v376 = vrot.slane %v375, 4
        %v378 = vshll.u32 %v249, 16
        %v380 = vrot.slane %v378, 5
        %v381 = vsel %vm295, %v376, %v380
        %v382 = vshrl.u32 %v249, 16
        %v384 = vrot.slane %v382, 4
        %v385 = vor.u32 %v384, %v380
        %v386 = vrot.slane %v385, 4
        %v388 = vshll.u32 %v250, 16
        %v390 = vrot.slane %v388, 5
        %v391 = vsel %vm295, %v386, %v390
        %v393 = vshrl.u32 %v251, 16
        %v395 = vrot.slane %v393, 4
        %v396 = vshll.u32 %v251, 16
        %v398 = vrot.slane %v396, 5
        %v399 = vor.u32 %v395, %v398
        %v400 = vrot.slane %v399, 4
        %v402 = vshll.u32 %v252, 16
        %v404 = vrot.slane %v402, 5
        %v405 = vsel %vm295, %v400, %v404
        %v406 = vshrl.u32 %v252, 16
        %v408 = vrot.slane %v406, 4
        %v409 = vor.u32 %v408, %v404
        %v410 = vrot.slane %v409, 4
        %v412 = vshll.u32 %v253, 16
        %v414 = vrot.slane %v412, 5
        %v415 = vsel %vm295, %v410, %v414
        %v417 = vshrl.u32 %v254, 16
        %v419 = vrot.slane %v417, 4
        %v420 = vshll.u32 %v254, 16
        %v422 = vrot.slane %v420, 5
        %v423 = vor.u32 %v419, %v422
        %v424 = vrot.slane %v423, 4
        %v426 = vshll.u32 %v255, 16
        %v428 = vrot.slane %v426, 5
        %v429 = vsel %vm295, %v424, %v428
        %v430 = vshrl.u32 %v255, 16
        %v432 = vrot.slane %v430, 4
        %v433 = vor.u32 %v432, %v428
        %v434 = vrot.slane %v433, 4
        %v436 = vshll.u32 %v256, 16
        %v438 = vrot.slane %v436, 5
        %v439 = vsel %vm295, %v434, %v438
        %v441 = vshrl.u32 %v257, 16
        %v443 = vrot.slane %v441, 4
        %v444 = vshll.u32 %v257, 16
        %v446 = vrot.slane %v444, 5
        %v447 = vor.u32 %v443, %v446
        %v448 = vrot.slane %v447, 4
        %v450 = vshll.u32 %v258, 16
        %v452 = vrot.slane %v450, 5
        %v453 = vsel %vm295, %v448, %v452
        %v454 = vshrl.u32 %v258, 16
        %v456 = vrot.slane %v454, 4
        %v457 = vor.u32 %v456, %v452
        %v458 = vrot.slane %v457, 4
        %v460 = vshll.u32 %v259, 16
        %v462 = vrot.slane %v460, 5
        %v463 = vsel %vm295, %v458, %v462
        %v465 = vshrl.u32 %v260, 16
        %v467 = vrot.slane %v465, 4
        %v468 = vshll.u32 %v260, 16
        %v470 = vrot.slane %v468, 5
        %v471 = vor.u32 %v467, %v470
        %v472 = vrot.slane %v471, 4
        %v474 = vshll.u32 %v261, 16
        %v476 = vrot.slane %v474, 5
        %v477 = vsel %vm295, %v472, %v476
        %v478 = vshrl.u32 %v261, 16
        %v480 = vrot.slane %v478, 4
        %v481 = vor.u32 %v480, %v476
        %v482 = vrot.slane %v481, 4
        %v484 = vshll.u32 %v262, 16
        %v486 = vrot.slane %v484, 5
        %v487 = vsel %vm295, %v482, %v486
        %v489 = vshrl.u32 %v263, 16
        %v491 = vrot.slane %v489, 4
        %v492 = vshll.u32 %v263, 16
        %v494 = vrot.slane %v492, 5
        %v495 = vor.u32 %v491, %v494
        %v496 = vrot.slane %v495, 4
        %v498 = vshll.u32 %v264, 16
        %v500 = vrot.slane %v498, 5
        %v501 = vsel %vm295, %v496, %v500
        %v502 = vshrl.u32 %v264, 16
        %v504 = vrot.slane %v502, 4
        %v505 = vor.u32 %v504, %v500
        %v506 = vrot.slane %v505, 4
        %v508 = vshll.u32 %v265, 16
        %v510 = vrot.slane %v508, 5
        %v511 = vsel %vm295, %v506, %v510
        %v513 = vshrl.u32 %v266, 16
        %v515 = vrot.slane %v513, 4
        %v516 = vshll.u32 %v266, 16
        %v518 = vrot.slane %v516, 5
        %v519 = vor.u32 %v515, %v518
        %v520 = vrot.slane %v519, 4
        %v522 = vshll.u32 %v267, 16
        %v524 = vrot.slane %v522, 5
        %v525 = vsel %vm295, %v520, %v524
        %v526 = vshrl.u32 %v267, 16
        %v528 = vrot.slane %v526, 4
        %v529 = vor.u32 %v528, %v524
        %v530 = vrot.slane %v529, 4
        %v532 = vshll.u32 %v268, 16
        %v534 = vrot.slane %v532, 5
        %v535 = vsel %vm295, %v530, %v534
        %v537 = vshrl.u32 %v269, 16
        %v539 = vrot.slane %v537, 4
        %v540 = vshll.u32 %v269, 16
        %v542 = vrot.slane %v540, 5
        %v543 = vor.u32 %v539, %v542
        %v544 = vrot.slane %v543, 4
        %v546 = vshll.u32 %v270, 16
        %v548 = vrot.slane %v546, 5
        %v549 = vsel %vm295, %v544, %v548
        %v550 = vshrl.u32 %v270, 16
        %v552 = vrot.slane %v550, 4
        %v553 = vor.u32 %v552, %v548
        %v554 = vrot.slane %v553, 4
        %v556 = vshll.u32 %v271, 16
        %v558 = vrot.slane %v556, 5
        %v559 = vsel %vm295, %v554, %v558
        %v561 = vshrl.u32 %v272, 16
        %v563 = vrot.slane %v561, 4
        %v564 = vshll.u32 %v272, 16
        %v566 = vrot.slane %v564, 5
        %v567 = vor.u32 %v563, %v566
        %v568 = vrot.slane %v567, 4
        %v570 = vshll.u32 %v273, 16
        %v572 = vrot.slane %v570, 5
        %v573 = vsel %vm295, %v568, %v572
        %v574 = vshrl.u32 %v273, 16
        %v576 = vrot.slane %v574, 4
        %v577 = vor.u32 %v576, %v572
        %v578 = vrot.slane %v577, 4
        %v580 = vshll.u32 %v274, 16
        %v582 = vrot.slane %v580, 5
        %v583 = vsel %vm295, %v578, %v582
        %v585 = vshrl.u32 %v275, 16
        %v587 = vrot.slane %v585, 4
        %v588 = vshll.u32 %v275, 16
        %v590 = vrot.slane %v588, 5
        %v591 = vor.u32 %v587, %v590
        %v592 = vrot.slane %v591, 4
        %v594 = vshll.u32 %v276, 16
        %v596 = vrot.slane %v594, 5
        %v597 = vsel %vm295, %v592, %v596
        %v598 = vshrl.u32 %v276, 16
        %v600 = vrot.slane %v598, 4
        %v601 = vor.u32 %v600, %v596
        %v602 = vrot.slane %v601, 4
        %v604 = vshll.u32 %v277, 16
        %v606 = vrot.slane %v604, 5
        %v607 = vsel %vm295, %v602, %v606
        %v609 = vshrl.u32 %v278, 16
        %v611 = vrot.slane %v609, 4
        %v612 = vshll.u32 %v278, 16
        %v614 = vrot.slane %v612, 5
        %v615 = vor.u32 %v611, %v614
        %v616 = vrot.slane %v615, 4
        %v618 = vshll.u32 %v279, 16
        %v620 = vrot.slane %v618, 5
        %v621 = vsel %vm295, %v616, %v620
        %v622 = vshrl.u32 %v279, 16
        %v624 = vrot.slane %v622, 4
        %v625 = vor.u32 %v624, %v620
        %v626 = vrot.slane %v625, 4
        %v628 = vshll.u32 %v280, 16
        %v630 = vrot.slane %v628, 5
        %v631 = vsel %vm295, %v626, %v630
        %v633 = vshrl.u32 %v281, 16
        %v635 = vrot.slane %v633, 4
        %v636 = vshll.u32 %v281, 16
        %v638 = vrot.slane %v636, 5
        %v639 = vor.u32 %v635, %v638
        %v640 = vrot.slane %v639, 4
        %v642 = vshll.u32 %v282, 16
        %v644 = vrot.slane %v642, 5
        %v645 = vsel %vm295, %v640, %v644
        %v646 = vshrl.u32 %v282, 16
        %v648 = vrot.slane %v646, 4
        %v649 = vor.u32 %v648, %v644
        %v650 = vrot.slane %v649, 4
        %v652 = vshll.u32 %v283, 16
        %v654 = vrot.slane %v652, 5
        %v655 = vsel %vm295, %v650, %v654
        %v657 = vshrl.u32 %v284, 16
        %v659 = vrot.slane %v657, 4
        %v660 = vshll.u32 %v284, 16
        %v662 = vrot.slane %v660, 5
        %v663 = vor.u32 %v659, %v662
        %v664 = vrot.slane %v663, 4
        %v666 = vshll.u32 %v285, 16
        %v668 = vrot.slane %v666, 5
        %v669 = vsel %vm295, %v664, %v668
        %v670 = vshrl.u32 %v285, 16
        %v672 = vrot.slane %v670, 4
        %v673 = vor.u32 %v672, %v668
        %v674 = vrot.slane %v673, 4
        %v676 = vshll.u32 %v286, 16
        %v678 = vrot.slane %v676, 5
        %v679 = vsel %vm295, %v674, %v678
        %v681 = vshrl.u32 %v287, 16
        %v683 = vrot.slane %v681, 4
        %v684 = vshll.u32 %v287, 16
        %v686 = vrot.slane %v684, 5
        %v687 = vor.u32 %v683, %v686
        %v688 = vrot.slane %v687, 4
        %v690 = vshll.u32 %v288, 16
        %v692 = vrot.slane %v690, 5
        %v693 = vsel %vm295, %v688, %v692
        %v694 = vshrl.u32 %v288, 16
        %v696 = vrot.slane %v694, 4
        %v697 = vor.u32 %v696, %v692
        %v698 = vrot.slane %v697, 4
        %v700 = vshll.u32 %v289, 16
        %v702 = vrot.slane %v700, 5
        %v703 = vsel %vm295, %v698, %v702
        %v705 = vshrl.u32 %v290, 16
        %v707 = vrot.slane %v705, 4
        %v708 = vshll.u32 %v290, 16
        %v710 = vrot.slane %v708, 5
        %v711 = vor.u32 %v707, %v710
        %v712 = vrot.slane %v711, 4
        %v714 = vshll.u32 %v291, 16
        %v716 = vrot.slane %v714, 5
        %v717 = vsel %vm295, %v712, %v716
        %v718 = vshrl.u32 %v291, 16
        %v720 = vrot.slane %v718, 4
        %v721 = vor.u32 %v720, %v716
        %v722 = vrot.slane %v721, 4
        %v724 = vshll.u32 %v292, 16
        %v726 = vrot.slane %v724, 5
        %v727 = vsel %vm295, %v722, %v726
        %vm782 = vcmask 1042432
        %vm783 = vcmask 1046532
        %vm784 = vmor %vm782, %vm783
        %v785 = vrot.slane %v239, 5
        %v786 = vrot.slane %v785, 4
        %v787 = vrot.slane %v240, 5
        %v788 = vsel %vm784, %v786, %v787
        %v789 = vrot.slane %v787, 4
        %v790 = vrot.slane %v241, 5
        %v791 = vsel %vm784, %v789, %v790
        %v792 = vrot.slane %v242, 5
        %v793 = vrot.slane %v792, 4
        %v794 = vrot.slane %v243, 5
        %v795 = vsel %vm784, %v793, %v794
        %v796 = vrot.slane %v794, 4
        %v797 = vrot.slane %v244, 5
        %v798 = vsel %vm784, %v796, %v797
        %v799 = vrot.slane %v245, 5
        %v800 = vrot.slane %v799, 4
        %v801 = vrot.slane %v246, 5
        %v802 = vsel %vm784, %v800, %v801
        %v803 = vrot.slane %v801, 4
        %v804 = vrot.slane %v247, 5
        %v805 = vsel %vm784, %v803, %v804
        %v806 = vrot.slane %v248, 5
        %v807 = vrot.slane %v806, 4
        %v808 = vrot.slane %v249, 5
        %v809 = vsel %vm784, %v807, %v808
        %v810 = vrot.slane %v808, 4
        %v811 = vrot.slane %v250, 5
        %v812 = vsel %vm784, %v810, %v811
        %v813 = vrot.slane %v251, 5
        %v814 = vrot.slane %v813, 4
        %v815 = vrot.slane %v252, 5
        %v816 = vsel %vm784, %v814, %v815
        %v817 = vrot.slane %v815, 4
        %v818 = vrot.slane %v253, 5
        %v819 = vsel %vm784, %v817, %v818
        %v820 = vrot.slane %v254, 5
        %v821 = vrot.slane %v820, 4
        %v822 = vrot.slane %v255, 5
        %v823 = vsel %vm784, %v821, %v822
        %v824 = vrot.slane %v822, 4
        %v825 = vrot.slane %v256, 5
        %v826 = vsel %vm784, %v824, %v825
        %v827 = vrot.slane %v257, 5
        %v828 = vrot.slane %v827, 4
        %v829 = vrot.slane %v258, 5
        %v830 = vsel %vm784, %v828, %v829
        %v831 = vrot.slane %v829, 4
        %v832 = vrot.slane %v259, 5
        %v833 = vsel %vm784, %v831, %v832
        %v834 = vrot.slane %v260, 5
        %v835 = vrot.slane %v834, 4
        %v836 = vrot.slane %v261, 5
        %v837 = vsel %vm784, %v835, %v836
        %v838 = vrot.slane %v836, 4
        %v839 = vrot.slane %v262, 5
        %v840 = vsel %vm784, %v838, %v839
        %v841 = vrot.slane %v263, 5
        %v842 = vrot.slane %v841, 4
        %v843 = vrot.slane %v264, 5
        %v844 = vsel %vm784, %v842, %v843
        %v845 = vrot.slane %v843, 4
        %v846 = vrot.slane %v265, 5
        %v847 = vsel %vm784, %v845, %v846
        %v848 = vrot.slane %v266, 5
        %v849 = vrot.slane %v848, 4
        %v850 = vrot.slane %v267, 5
        %v851 = vsel %vm784, %v849, %v850
        %v852 = vrot.slane %v850, 4
        %v853 = vrot.slane %v268, 5
        %v854 = vsel %vm784, %v852, %v853
        %v855 = vrot.slane %v269, 5
        %v856 = vrot.slane %v855, 4
        %v857 = vrot.slane %v270, 5
        %v858 = vsel %vm784, %v856, %v857
        %v859 = vrot.slane %v857, 4
        %v860 = vrot.slane %v271, 5
        %v861 = vsel %vm784, %v859, %v860
        %v862 = vrot.slane %v272, 5
        %v863 = vrot.slane %v862, 4
        %v864 = vrot.slane %v273, 5
        %v865 = vsel %vm784, %v863, %v864
        %v866 = vrot.slane %v864, 4
        %v867 = vrot.slane %v274, 5
        %v868 = vsel %vm784, %v866, %v867
        %v869 = vrot.slane %v275, 5
        %v870 = vrot.slane %v869, 4
        %v871 = vrot.slane %v276, 5
        %v872 = vsel %vm784, %v870, %v871
        %v873 = vrot.slane %v871, 4
        %v874 = vrot.slane %v277, 5
        %v875 = vsel %vm784, %v873, %v874
        %v876 = vrot.slane %v278, 5
        %v877 = vrot.slane %v876, 4
        %v878 = vrot.slane %v279, 5
        %v879 = vsel %vm784, %v877, %v878
        %v880 = vrot.slane %v878, 4
        %v881 = vrot.slane %v280, 5
        %v882 = vsel %vm784, %v880, %v881
        %v883 = vrot.slane %v281, 5
        %v884 = vrot.slane %v883, 4
        %v885 = vrot.slane %v282, 5
        %v886 = vsel %vm784, %v884, %v885
        %v887 = vrot.slane %v885, 4
        %v888 = vrot.slane %v283, 5
        %v889 = vsel %vm784, %v887, %v888
        %v890 = vrot.slane %v284, 5
        %v891 = vrot.slane %v890, 4
        %v892 = vrot.slane %v285, 5
        %v893 = vsel %vm784, %v891, %v892
        %v894 = vrot.slane %v892, 4
        %v895 = vrot.slane %v286, 5
        %v896 = vsel %vm784, %v894, %v895
        %v897 = vrot.slane %v287, 5
        %v898 = vrot.slane %v897, 4
        %v899 = vrot.slane %v288, 5
        %v900 = vsel %vm784, %v898, %v899
        %v901 = vrot.slane %v899, 4
        %v902 = vrot.slane %v289, 5
        %v903 = vsel %vm784, %v901, %v902
        %v904 = vrot.slane %v290, 5
        %v905 = vrot.slane %v904, 4
        %v906 = vrot.slane %v291, 5
        %v907 = vsel %vm784, %v905, %v906
        %v908 = vrot.slane %v906, 4
        %v909 = vrot.slane %v292, 5
        %v910 = vsel %vm784, %v908, %v909
        %v911 = vunpack.c.l.b16 %v239
        %v912 = vunpack.c.l.b16 %v240
        %v913 = vunpack.c.l.b16 %v242
        %v914 = vunpack.c.l.b16 %v243
        %v915 = vunpack.c.l.b16 %v245
        %v916 = vunpack.c.l.b16 %v246
        %v917 = vunpack.c.l.b16 %v248
        %v918 = vunpack.c.l.b16 %v249
        %v919 = vunpack.c.l.b16 %v251
        %v920 = vunpack.c.l.b16 %v252
        %v921 = vunpack.c.l.b16 %v254
        %v922 = vunpack.c.l.b16 %v255
        %v923 = vunpack.c.l.b16 %v257
        %v924 = vunpack.c.l.b16 %v258
        %v925 = vunpack.c.l.b16 %v260
        %v926 = vunpack.c.l.b16 %v261
        %v927 = vunpack.c.l.b16 %v263
        %v928 = vunpack.c.l.b16 %v264
        %v929 = vunpack.c.l.b16 %v266
        %v930 = vunpack.c.l.b16 %v267
        %v931 = vunpack.c.l.b16 %v269
        %v932 = vunpack.c.l.b16 %v270
        %v933 = vunpack.c.l.b16 %v272
        %v934 = vunpack.c.l.b16 %v273
        %v935 = vunpack.c.l.b16 %v275
        %v936 = vunpack.c.l.b16 %v276
        %v937 = vunpack.c.l.b16 %v278
        %v938 = vunpack.c.l.b16 %v279
        %v939 = vunpack.c.l.b16 %v281
        %v940 = vunpack.c.l.b16 %v282
        %v941 = vunpack.c.l.b16 %v284
        %v942 = vunpack.c.l.b16 %v285
        %v943 = vpack.c.b16 %v912, %v911
        %v944 = vpack.c.b16 %v914, %v913
        %v945 = vpack.c.b16 %v916, %v915
        %v946 = vpack.c.b16 %v918, %v917
        %v947 = vpack.c.b16 %v920, %v919
        %v948 = vpack.c.b16 %v922, %v921
        %v949 = vpack.c.b16 %v924, %v923
        %v950 = vpack.c.b16 %v926, %v925
        %v951 = vpack.c.b16 %v928, %v927
        %v952 = vpack.c.b16 %v930, %v929
        %v953 = vpack.c.b16 %v932, %v931
        %v954 = vpack.c.b16 %v934, %v933
        %v955 = vpack.c.b16 %v936, %v935
        %v956 = vpack.c.b16 %v938, %v937
        %v957 = vpack.c.b16 %v940, %v939
        %v958 = vpack.c.b16 %v942, %v941
        %v959 = vunpack.c.l.b16 %v309
        %v960 = vunpack.c.l.b16 %v319
        %v961 = vunpack.c.l.b16 %v333
        %v962 = vunpack.c.l.b16 %v343
        %v963 = vunpack.c.l.b16 %v357
        %v964 = vunpack.c.l.b16 %v367
        %v965 = vunpack.c.l.b16 %v381
        %v966 = vunpack.c.l.b16 %v391
        %v967 = vunpack.c.l.b16 %v405
        %v968 = vunpack.c.l.b16 %v415
        %v969 = vunpack.c.l.b16 %v429
        %v970 = vunpack.c.l.b16 %v439
        %v971 = vunpack.c.l.b16 %v453
        %v972 = vunpack.c.l.b16 %v463
        %v973 = vunpack.c.l.b16 %v477
        %v974 = vunpack.c.l.b16 %v487
        %v975 = vunpack.c.l.b16 %v501
        %v976 = vunpack.c.l.b16 %v511
        %v977 = vunpack.c.l.b16 %v525
        %v978 = vunpack.c.l.b16 %v535
        %v979 = vunpack.c.l.b16 %v549
        %v980 = vunpack.c.l.b16 %v559
        %v981 = vunpack.c.l.b16 %v573
        %v982 = vunpack.c.l.b16 %v583
        %v983 = vunpack.c.l.b16 %v597
        %v984 = vunpack.c.l.b16 %v607
        %v985 = vunpack.c.l.b16 %v621
        %v986 = vunpack.c.l.b16 %v631
        %v987 = vunpack.c.l.b16 %v645
        %v988 = vunpack.c.l.b16 %v655
        %v989 = vunpack.c.l.b16 %v669
        %v990 = vunpack.c.l.b16 %v679
        %v991 = vpack.c.b16 %v960, %v959
        %v992 = vpack.c.b16 %v962, %v961
        %v993 = vpack.c.b16 %v964, %v963
        %v994 = vpack.c.b16 %v966, %v965
        %v995 = vpack.c.b16 %v968, %v967
        %v996 = vpack.c.b16 %v970, %v969
        %v997 = vpack.c.b16 %v972, %v971
        %v998 = vpack.c.b16 %v974, %v973
        %v999 = vpack.c.b16 %v976, %v975
        %v1000 = vpack.c.b16 %v978, %v977
        %v1001 = vpack.c.b16 %v980, %v979
        %v1002 = vpack.c.b16 %v982, %v981
        %v1003 = vpack.c.b16 %v984, %v983
        %v1004 = vpack.c.b16 %v986, %v985
        %v1005 = vpack.c.b16 %v988, %v987
        %v1006 = vpack.c.b16 %v990, %v989
        %1007 = vrot.lane.b32.xlu0 %v991, 4
        %v1008 = vpop.permute.xlu0 %1007
        %1009 = vrot.lane.b32.xlu0 %v992, 4
        %v1010 = vpop.permute.xlu0 %1009
        %1011 = vrot.lane.b32.xlu0 %v993, 4
        %v1012 = vpop.permute.xlu0 %1011
        %1013 = vrot.lane.b32.xlu0 %v994, 4
        %v1014 = vpop.permute.xlu0 %1013
        %1015 = vrot.lane.b32.xlu0 %v995, 4
        %v1016 = vpop.permute.xlu0 %1015
        %1017 = vrot.lane.b32.xlu0 %v996, 4
        %v1018 = vpop.permute.xlu0 %1017
        %1019 = vrot.lane.b32.xlu0 %v997, 4
        %v1020 = vpop.permute.xlu0 %1019
        %1021 = vrot.lane.b32.xlu0 %v998, 4
        %v1022 = vpop.permute.xlu0 %1021
        %1023 = vrot.lane.b32.xlu0 %v999, 4
        %v1024 = vpop.permute.xlu0 %1023
        %1025 = vrot.lane.b32.xlu0 %v1000, 4
        %v1026 = vpop.permute.xlu0 %1025
        %1027 = vrot.lane.b32.xlu0 %v1001, 4
        %v1028 = vpop.permute.xlu0 %1027
        %1029 = vrot.lane.b32.xlu0 %v1002, 4
        %v1030 = vpop.permute.xlu0 %1029
        %1031 = vrot.lane.b32.xlu0 %v1003, 4
        %v1032 = vpop.permute.xlu0 %1031
        %1033 = vrot.lane.b32.xlu0 %v1004, 4
        %v1034 = vpop.permute.xlu0 %1033
        %1035 = vrot.lane.b32.xlu0 %v1005, 4
        %v1036 = vpop.permute.xlu0 %1035
        %1037 = vrot.lane.b32.xlu0 %v1006, 4
        %v1038 = vpop.permute.xlu0 %1037
        %v1039 = vunpack.c.l.b16 %v788
        %v1040 = vunpack.c.l.b16 %v791
        %v1041 = vunpack.c.l.b16 %v795
        %v1042 = vunpack.c.l.b16 %v798
        %v1043 = vunpack.c.l.b16 %v802
        %v1044 = vunpack.c.l.b16 %v805
        %v1045 = vunpack.c.l.b16 %v809
        %v1046 = vunpack.c.l.b16 %v812
        %v1047 = vunpack.c.l.b16 %v816
        %v1048 = vunpack.c.l.b16 %v819
        %v1049 = vunpack.c.l.b16 %v823
        %v1050 = vunpack.c.l.b16 %v826
        %v1051 = vunpack.c.l.b16 %v830
        %v1052 = vunpack.c.l.b16 %v833
        %v1053 = vunpack.c.l.b16 %v837
        %v1054 = vunpack.c.l.b16 %v840
        %v1055 = vunpack.c.l.b16 %v844
        %v1056 = vunpack.c.l.b16 %v847
        %v1057 = vunpack.c.l.b16 %v851
        %v1058 = vunpack.c.l.b16 %v854
        %v1059 = vunpack.c.l.b16 %v858
        %v1060 = vunpack.c.l.b16 %v861
        %v1061 = vunpack.c.l.b16 %v865
        %v1062 = vunpack.c.l.b16 %v868
        %v1063 = vunpack.c.l.b16 %v872
        %v1064 = vunpack.c.l.b16 %v875
        %v1065 = vunpack.c.l.b16 %v879
        %v1066 = vunpack.c.l.b16 %v882
        %v1067 = vunpack.c.l.b16 %v886
        %v1068 = vunpack.c.l.b16 %v889
        %v1069 = vunpack.c.l.b16 %v893
        %v1070 = vunpack.c.l.b16 %v896
        %v1071 = vpack.c.b16 %v1040, %v1039
        %v1072 = vpack.c.b16 %v1042, %v1041
        %v1073 = vpack.c.b16 %v1044, %v1043
        %v1074 = vpack.c.b16 %v1046, %v1045
        %v1075 = vpack.c.b16 %v1048, %v1047
        %v1076 = vpack.c.b16 %v1050, %v1049
        %v1077 = vpack.c.b16 %v1052, %v1051
        %v1078 = vpack.c.b16 %v1054, %v1053
        %v1079 = vpack.c.b16 %v1056, %v1055
        %v1080 = vpack.c.b16 %v1058, %v1057
        %v1081 = vpack.c.b16 %v1060, %v1059
        %v1082 = vpack.c.b16 %v1062, %v1061
        %v1083 = vpack.c.b16 %v1064, %v1063
        %v1084 = vpack.c.b16 %v1066, %v1065
        %v1085 = vpack.c.b16 %v1068, %v1067
        %v1086 = vpack.c.b16 %v1070, %v1069
        %1087 = vrot.lane.b32.xlu0 %v1071, 8
        %v1088 = vpop.permute.xlu0 %1087
        %1089 = vrot.lane.b32.xlu0 %v1072, 8
        %v1090 = vpop.permute.xlu0 %1089
        %1091 = vrot.lane.b32.xlu0 %v1073, 8
        %v1092 = vpop.permute.xlu0 %1091
        %1093 = vrot.lane.b32.xlu0 %v1074, 8
        %v1094 = vpop.permute.xlu0 %1093
        %1095 = vrot.lane.b32.xlu0 %v1075, 8
        %v1096 = vpop.permute.xlu0 %1095
        %1097 = vrot.lane.b32.xlu0 %v1076, 8
        %v1098 = vpop.permute.xlu0 %1097
        %1099 = vrot.lane.b32.xlu0 %v1077, 8
        %v1100 = vpop.permute.xlu0 %1099
        %1101 = vrot.lane.b32.xlu0 %v1078, 8
        %v1102 = vpop.permute.xlu0 %1101
        %1103 = vrot.lane.b32.xlu0 %v1079, 8
        %v1104 = vpop.permute.xlu0 %1103
        %1105 = vrot.lane.b32.xlu0 %v1080, 8
        %v1106 = vpop.permute.xlu0 %1105
        %1107 = vrot.lane.b32.xlu0 %v1081, 8
        %v1108 = vpop.permute.xlu0 %1107
        %1109 = vrot.lane.b32.xlu0 %v1082, 8
        %v1110 = vpop.permute.xlu0 %1109
        %1111 = vrot.lane.b32.xlu0 %v1083, 8
        %v1112 = vpop.permute.xlu0 %1111
        %1113 = vrot.lane.b32.xlu0 %v1084, 8
        %v1114 = vpop.permute.xlu0 %1113
        %1115 = vrot.lane.b32.xlu0 %v1085, 8
        %v1116 = vpop.permute.xlu0 %1115
        %1117 = vrot.lane.b32.xlu0 %v1086, 8
        %v1118 = vpop.permute.xlu0 %1117
        %v1119 = vunpack.c.l.b16 %v287
        %v1120 = vunpack.c.l.b16 %v288
        %v1121 = vpack.c.b16 %v1120, %v1119
        %1122 = vrot.lane.b32.xlu0 %v944, 12
        %v1123 = vpop.permute.xlu0 %1122
        %1124 = vrot.lane.b32.xlu0 %v945, 12
        %v1125 = vpop.permute.xlu0 %1124
        %1126 = vrot.lane.b32.xlu0 %v946, 12
        %v1127 = vpop.permute.xlu0 %1126
        %1128 = vrot.lane.b32.xlu0 %v947, 12
        %v1129 = vpop.permute.xlu0 %1128
        %1130 = vrot.lane.b32.xlu0 %v948, 12
        %v1131 = vpop.permute.xlu0 %1130
        %1132 = vrot.lane.b32.xlu0 %v949, 12
        %v1133 = vpop.permute.xlu0 %1132
        %1134 = vrot.lane.b32.xlu0 %v950, 12
        %v1135 = vpop.permute.xlu0 %1134
        %1136 = vrot.lane.b32.xlu0 %v951, 12
        %v1137 = vpop.permute.xlu0 %1136
        %1138 = vrot.lane.b32.xlu0 %v952, 12
        %v1139 = vpop.permute.xlu0 %1138
        %1140 = vrot.lane.b32.xlu0 %v953, 12
        %v1141 = vpop.permute.xlu0 %1140
        %1142 = vrot.lane.b32.xlu0 %v954, 12
        %v1143 = vpop.permute.xlu0 %1142
        %1144 = vrot.lane.b32.xlu0 %v955, 12
        %v1145 = vpop.permute.xlu0 %1144
        %1146 = vrot.lane.b32.xlu0 %v956, 12
        %v1147 = vpop.permute.xlu0 %1146
        %1148 = vrot.lane.b32.xlu0 %v957, 12
        %v1149 = vpop.permute.xlu0 %1148
        %1150 = vrot.lane.b32.xlu0 %v958, 12
        %v1151 = vpop.permute.xlu0 %1150
        %1152 = vrot.lane.b32.xlu0 %v1121, 12
        %v1153 = vpop.permute.xlu0 %1152
        %v1154 = vunpack.c.l.b16 %v693
        %v1155 = vunpack.c.l.b16 %v703
        %v1156 = vpack.c.b16 %v1155, %v1154
        %1157 = vrot.lane.b32.xlu0 %v992, 16
        %v1158 = vpop.permute.xlu0 %1157
        %1159 = vrot.lane.b32.xlu0 %v993, 16
        %v1160 = vpop.permute.xlu0 %1159
        %1161 = vrot.lane.b32.xlu0 %v994, 16
        %v1162 = vpop.permute.xlu0 %1161
        %1163 = vrot.lane.b32.xlu0 %v995, 16
        %v1164 = vpop.permute.xlu0 %1163
        %1165 = vrot.lane.b32.xlu0 %v996, 16
        %v1166 = vpop.permute.xlu0 %1165
        %1167 = vrot.lane.b32.xlu0 %v997, 16
        %v1168 = vpop.permute.xlu0 %1167
        %1169 = vrot.lane.b32.xlu0 %v998, 16
        %v1170 = vpop.permute.xlu0 %1169
        %1171 = vrot.lane.b32.xlu0 %v999, 16
        %v1172 = vpop.permute.xlu0 %1171
        %1173 = vrot.lane.b32.xlu0 %v1000, 16
        %v1174 = vpop.permute.xlu0 %1173
        %1175 = vrot.lane.b32.xlu0 %v1001, 16
        %v1176 = vpop.permute.xlu0 %1175
        %1177 = vrot.lane.b32.xlu0 %v1002, 16
        %v1178 = vpop.permute.xlu0 %1177
        %1179 = vrot.lane.b32.xlu0 %v1003, 16
        %v1180 = vpop.permute.xlu0 %1179
        %1181 = vrot.lane.b32.xlu0 %v1004, 16
        %v1182 = vpop.permute.xlu0 %1181
        %1183 = vrot.lane.b32.xlu0 %v1005, 16
        %v1184 = vpop.permute.xlu0 %1183
        %1185 = vrot.lane.b32.xlu0 %v1006, 16
        %v1186 = vpop.permute.xlu0 %1185
        %1187 = vrot.lane.b32.xlu0 %v1156, 16
        %v1188 = vpop.permute.xlu0 %1187
        %v1189 = vunpack.c.l.b16 %v900
        %v1190 = vunpack.c.l.b16 %v903
        %v1191 = vpack.c.b16 %v1190, %v1189
        %1192 = vrot.lane.b32.xlu0 %v1072, 20
        %v1193 = vpop.permute.xlu0 %1192
        %1194 = vrot.lane.b32.xlu0 %v1073, 20
        %v1195 = vpop.permute.xlu0 %1194
        %1196 = vrot.lane.b32.xlu0 %v1074, 20
        %v1197 = vpop.permute.xlu0 %1196
        %1198 = vrot.lane.b32.xlu0 %v1075, 20
        %v1199 = vpop.permute.xlu0 %1198
        %1200 = vrot.lane.b32.xlu0 %v1076, 20
        %v1201 = vpop.permute.xlu0 %1200
        %1202 = vrot.lane.b32.xlu0 %v1077, 20
        %v1203 = vpop.permute.xlu0 %1202
        %1204 = vrot.lane.b32.xlu0 %v1078, 20
        %v1205 = vpop.permute.xlu0 %1204
        %1206 = vrot.lane.b32.xlu0 %v1079, 20
        %v1207 = vpop.permute.xlu0 %1206
        %1208 = vrot.lane.b32.xlu0 %v1080, 20
        %v1209 = vpop.permute.xlu0 %1208
        %1210 = vrot.lane.b32.xlu0 %v1081, 20
        %v1211 = vpop.permute.xlu0 %1210
        %1212 = vrot.lane.b32.xlu0 %v1082, 20
        %v1213 = vpop.permute.xlu0 %1212
        %1214 = vrot.lane.b32.xlu0 %v1083, 20
        %v1215 = vpop.permute.xlu0 %1214
        %1216 = vrot.lane.b32.xlu0 %v1084, 20
        %v1217 = vpop.permute.xlu0 %1216
        %1218 = vrot.lane.b32.xlu0 %v1085, 20
        %v1219 = vpop.permute.xlu0 %1218
        %1220 = vrot.lane.b32.xlu0 %v1086, 20
        %v1221 = vpop.permute.xlu0 %1220
        %1222 = vrot.lane.b32.xlu0 %v1191, 20
        %v1223 = vpop.permute.xlu0 %1222
        %v1224 = vunpack.c.l.b16 %v290
        %v1225 = vunpack.c.l.b16 %v291
        %v1226 = vpack.c.b16 %v1225, %v1224
        %1227 = vrot.lane.b32.xlu0 %v945, 24
        %v1228 = vpop.permute.xlu0 %1227
        %1229 = vrot.lane.b32.xlu0 %v946, 24
        %v1230 = vpop.permute.xlu0 %1229
        %1231 = vrot.lane.b32.xlu0 %v947, 24
        %v1232 = vpop.permute.xlu0 %1231
        %1233 = vrot.lane.b32.xlu0 %v948, 24
        %v1234 = vpop.permute.xlu0 %1233
        %1235 = vrot.lane.b32.xlu0 %v949, 24
        %v1236 = vpop.permute.xlu0 %1235
        %1237 = vrot.lane.b32.xlu0 %v950, 24
        %v1238 = vpop.permute.xlu0 %1237
        %1239 = vrot.lane.b32.xlu0 %v951, 24
        %v1240 = vpop.permute.xlu0 %1239
        %1241 = vrot.lane.b32.xlu0 %v952, 24
        %v1242 = vpop.permute.xlu0 %1241
        %1243 = vrot.lane.b32.xlu0 %v953, 24
        %v1244 = vpop.permute.xlu0 %1243
        %1245 = vrot.lane.b32.xlu0 %v954, 24
        %v1246 = vpop.permute.xlu0 %1245
        %1247 = vrot.lane.b32.xlu0 %v955, 24
        %v1248 = vpop.permute.xlu0 %1247
        %1249 = vrot.lane.b32.xlu0 %v956, 24
        %v1250 = vpop.permute.xlu0 %1249
        %1251 = vrot.lane.b32.xlu0 %v957, 24
        %v1252 = vpop.permute.xlu0 %1251
        %1253 = vrot.lane.b32.xlu0 %v958, 24
        %v1254 = vpop.permute.xlu0 %1253
        %1255 = vrot.lane.b32.xlu0 %v1121, 24
        %v1256 = vpop.permute.xlu0 %1255
        %1257 = vrot.lane.b32.xlu0 %v1226, 24
        %v1258 = vpop.permute.xlu0 %1257
        %v1259 = vunpack.c.l.b16 %v717
        %v1260 = vunpack.c.l.b16 %v727
        %v1261 = vpack.c.b16 %v1260, %v1259
        %1262 = vrot.lane.b32.xlu0 %v993, 28
        %v1263 = vpop.permute.xlu0 %1262
        %1264 = vrot.lane.b32.xlu0 %v994, 28
        %v1265 = vpop.permute.xlu0 %1264
        %1266 = vrot.lane.b32.xlu0 %v995, 28
        %v1267 = vpop.permute.xlu0 %1266
        %1268 = vrot.lane.b32.xlu0 %v996, 28
        %v1269 = vpop.permute.xlu0 %1268
        %1270 = vrot.lane.b32.xlu0 %v997, 28
        %v1271 = vpop.permute.xlu0 %1270
        %1272 = vrot.lane.b32.xlu0 %v998, 28
        %v1273 = vpop.permute.xlu0 %1272
        %1274 = vrot.lane.b32.xlu0 %v999, 28
        %v1275 = vpop.permute.xlu0 %1274
        %1276 = vrot.lane.b32.xlu0 %v1000, 28
        %v1277 = vpop.permute.xlu0 %1276
        %1278 = vrot.lane.b32.xlu0 %v1001, 28
        %v1279 = vpop.permute.xlu0 %1278
        %1280 = vrot.lane.b32.xlu0 %v1002, 28
        %v1281 = vpop.permute.xlu0 %1280
        %1282 = vrot.lane.b32.xlu0 %v1003, 28
        %v1283 = vpop.permute.xlu0 %1282
        %1284 = vrot.lane.b32.xlu0 %v1004, 28
        %v1285 = vpop.permute.xlu0 %1284
        %1286 = vrot.lane.b32.xlu0 %v1005, 28
        %v1287 = vpop.permute.xlu0 %1286
        %1288 = vrot.lane.b32.xlu0 %v1006, 28
        %v1289 = vpop.permute.xlu0 %1288
        %1290 = vrot.lane.b32.xlu0 %v1156, 28
        %v1291 = vpop.permute.xlu0 %1290
        %1292 = vrot.lane.b32.xlu0 %v1261, 28
        %v1293 = vpop.permute.xlu0 %1292
        %v1294 = vunpack.c.l.b16 %v907
        %v1295 = vunpack.c.l.b16 %v910
        %v1296 = vpack.c.b16 %v1295, %v1294
        %1297 = vrot.lane.b32.xlu0 %v1073, 32
        %v1298 = vpop.permute.xlu0 %1297
        %1299 = vrot.lane.b32.xlu0 %v1074, 32
        %v1300 = vpop.permute.xlu0 %1299
        %1301 = vrot.lane.b32.xlu0 %v1075, 32
        %v1302 = vpop.permute.xlu0 %1301
        %1303 = vrot.lane.b32.xlu0 %v1076, 32
        %v1304 = vpop.permute.xlu0 %1303
        %1305 = vrot.lane.b32.xlu0 %v1077, 32
        %v1306 = vpop.permute.xlu0 %1305
        %1307 = vrot.lane.b32.xlu0 %v1078, 32
        %v1308 = vpop.permute.xlu0 %1307
        %1309 = vrot.lane.b32.xlu0 %v1079, 32
        %v1310 = vpop.permute.xlu0 %1309
        %1311 = vrot.lane.b32.xlu0 %v1080, 32
        %v1312 = vpop.permute.xlu0 %1311
        %1313 = vrot.lane.b32.xlu0 %v1081, 32
        %v1314 = vpop.permute.xlu0 %1313
        %1315 = vrot.lane.b32.xlu0 %v1082, 32
        %v1316 = vpop.permute.xlu0 %1315
        %1317 = vrot.lane.b32.xlu0 %v1083, 32
        %v1318 = vpop.permute.xlu0 %1317
        %1319 = vrot.lane.b32.xlu0 %v1084, 32
        %v1320 = vpop.permute.xlu0 %1319
        %1321 = vrot.lane.b32.xlu0 %v1085, 32
        %v1322 = vpop.permute.xlu0 %1321
        %1323 = vrot.lane.b32.xlu0 %v1086, 32
        %v1324 = vpop.permute.xlu0 %1323
        %1325 = vrot.lane.b32.xlu0 %v1191, 32
        %v1326 = vpop.permute.xlu0 %1325
        %1327 = vrot.lane.b32.xlu0 %v1296, 32
        %v1328 = vpop.permute.xlu0 %1327
        %vm1329 = vcmask 31744
        %v1332 = vsel %vm1329, %v943, %v1008
        %v1335 = vsel %vm1329, %v944, %v1010
        %v1338 = vsel %vm1329, %v945, %v1012
        %v1341 = vsel %vm1329, %v946, %v1014
        %v1344 = vsel %vm1329, %v947, %v1016
        %v1347 = vsel %vm1329, %v948, %v1018
        %v1350 = vsel %vm1329, %v949, %v1020
        %v1353 = vsel %vm1329, %v950, %v1022
        %v1356 = vsel %vm1329, %v951, %v1024
        %v1359 = vsel %vm1329, %v952, %v1026
        %v1362 = vsel %vm1329, %v953, %v1028
        %v1365 = vsel %vm1329, %v954, %v1030
        %v1368 = vsel %vm1329, %v955, %v1032
        %v1371 = vsel %vm1329, %v956, %v1034
        %v1374 = vsel %vm1329, %v957, %v1036
        %v1377 = vsel %vm1329, %v958, %v1038
        %vm1378 = vcmask 64512
        %v1380 = vsel %vm1378, %v1332, %v1088
        %v1382 = vsel %vm1378, %v1335, %v1090
        %v1384 = vsel %vm1378, %v1338, %v1092
        %v1386 = vsel %vm1378, %v1341, %v1094
        %v1388 = vsel %vm1378, %v1344, %v1096
        %v1390 = vsel %vm1378, %v1347, %v1098
        %v1392 = vsel %vm1378, %v1350, %v1100
        %v1394 = vsel %vm1378, %v1353, %v1102
        %v1396 = vsel %vm1378, %v1356, %v1104
        %v1398 = vsel %vm1378, %v1359, %v1106
        %v1400 = vsel %vm1378, %v1362, %v1108
        %v1402 = vsel %vm1378, %v1365, %v1110
        %v1404 = vsel %vm1378, %v1368, %v1112
        %v1406 = vsel %vm1378, %v1371, %v1114
        %v1408 = vsel %vm1378, %v1374, %v1116
        %v1410 = vsel %vm1378, %v1377, %v1118
        %vm1411 = vcmask 97280
        %v1413 = vsel %vm1411, %v1380, %v1123
        %v1415 = vsel %vm1411, %v1382, %v1125
        %v1417 = vsel %vm1411, %v1384, %v1127
        %v1419 = vsel %vm1411, %v1386, %v1129
        %v1421 = vsel %vm1411, %v1388, %v1131
        %v1423 = vsel %vm1411, %v1390, %v1133
        %v1425 = vsel %vm1411, %v1392, %v1135
        %v1427 = vsel %vm1411, %v1394, %v1137
        %v1429 = vsel %vm1411, %v1396, %v1139
        %v1431 = vsel %vm1411, %v1398, %v1141
        %v1433 = vsel %vm1411, %v1400, %v1143
        %v1435 = vsel %vm1411, %v1402, %v1145
        %v1437 = vsel %vm1411, %v1404, %v1147
        %v1439 = vsel %vm1411, %v1406, %v1149
        %v1441 = vsel %vm1411, %v1408, %v1151
        %v1443 = vsel %vm1411, %v1410, %v1153
        %vm1444 = vcmask 130048
        %v1446 = vsel %vm1444, %v1413, %v1158
        %v1448 = vsel %vm1444, %v1415, %v1160
        %v1450 = vsel %vm1444, %v1417, %v1162
        %v1452 = vsel %vm1444, %v1419, %v1164
        %v1454 = vsel %vm1444, %v1421, %v1166
        %v1456 = vsel %vm1444, %v1423, %v1168
        %v1458 = vsel %vm1444, %v1425, %v1170
        %v1460 = vsel %vm1444, %v1427, %v1172
        %v1462 = vsel %vm1444, %v1429, %v1174
        %v1464 = vsel %vm1444, %v1431, %v1176
        %v1466 = vsel %vm1444, %v1433, %v1178
        %v1468 = vsel %vm1444, %v1435, %v1180
        %v1470 = vsel %vm1444, %v1437, %v1182
        %v1472 = vsel %vm1444, %v1439, %v1184
        %v1474 = vsel %vm1444, %v1441, %v1186
        %v1476 = vsel %vm1444, %v1443, %v1188
        %vm1477 = vcmask 162816
        %v1479 = vsel %vm1477, %v1446, %v1193
        %v1481 = vsel %vm1477, %v1448, %v1195
        %v1483 = vsel %vm1477, %v1450, %v1197
        %v1485 = vsel %vm1477, %v1452, %v1199
        %v1487 = vsel %vm1477, %v1454, %v1201
        %v1489 = vsel %vm1477, %v1456, %v1203
        %v1491 = vsel %vm1477, %v1458, %v1205
        %v1493 = vsel %vm1477, %v1460, %v1207
        %v1495 = vsel %vm1477, %v1462, %v1209
        %v1497 = vsel %vm1477, %v1464, %v1211
        %v1499 = vsel %vm1477, %v1466, %v1213
        %v1501 = vsel %vm1477, %v1468, %v1215
        %v1503 = vsel %vm1477, %v1470, %v1217
        %v1505 = vsel %vm1477, %v1472, %v1219
        %v1507 = vsel %vm1477, %v1474, %v1221
        %v1509 = vsel %vm1477, %v1476, %v1223
        %vm1510 = vcmask 195584
        %v1512 = vsel %vm1510, %v1479, %v1228
        %v1514 = vsel %vm1510, %v1481, %v1230
        %v1516 = vsel %vm1510, %v1483, %v1232
        %v1518 = vsel %vm1510, %v1485, %v1234
        %v1520 = vsel %vm1510, %v1487, %v1236
        %v1522 = vsel %vm1510, %v1489, %v1238
        %v1524 = vsel %vm1510, %v1491, %v1240
        %v1526 = vsel %vm1510, %v1493, %v1242
        %v1528 = vsel %vm1510, %v1495, %v1244
        %v1530 = vsel %vm1510, %v1497, %v1246
        %v1532 = vsel %vm1510, %v1499, %v1248
        %v1534 = vsel %vm1510, %v1501, %v1250
        %v1536 = vsel %vm1510, %v1503, %v1252
        %v1538 = vsel %vm1510, %v1505, %v1254
        %v1540 = vsel %vm1510, %v1507, %v1256
        %v1542 = vsel %vm1510, %v1509, %v1258
        %vm1543 = vcmask 228352
        %v1545 = vsel %vm1543, %v1512, %v1263
        %v1547 = vsel %vm1543, %v1514, %v1265
        %v1549 = vsel %vm1543, %v1516, %v1267
        %v1551 = vsel %vm1543, %v1518, %v1269
        %v1553 = vsel %vm1543, %v1520, %v1271
        %v1555 = vsel %vm1543, %v1522, %v1273
        %v1557 = vsel %vm1543, %v1524, %v1275
        %v1559 = vsel %vm1543, %v1526, %v1277
        %v1561 = vsel %vm1543, %v1528, %v1279
        %v1563 = vsel %vm1543, %v1530, %v1281
        %v1565 = vsel %vm1543, %v1532, %v1283
        %v1567 = vsel %vm1543, %v1534, %v1285
        %v1569 = vsel %vm1543, %v1536, %v1287
        %v1571 = vsel %vm1543, %v1538, %v1289
        %v1573 = vsel %vm1543, %v1540, %v1291
        %v1575 = vsel %vm1543, %v1542, %v1293
        %vm1576 = vcmask 261120
        %v1578 = vsel %vm1576, %v1545, %v1298
        %v1580 = vsel %vm1576, %v1547, %v1300
        %v1582 = vsel %vm1576, %v1549, %v1302
        %v1584 = vsel %vm1576, %v1551, %v1304
        %v1586 = vsel %vm1576, %v1553, %v1306
        %v1588 = vsel %vm1576, %v1555, %v1308
        %v1590 = vsel %vm1576, %v1557, %v1310
        %v1592 = vsel %vm1576, %v1559, %v1312
        %v1594 = vsel %vm1576, %v1561, %v1314
        %v1596 = vsel %vm1576, %v1563, %v1316
        %v1598 = vsel %vm1576, %v1565, %v1318
        %v1600 = vsel %vm1576, %v1567, %v1320
        %v1602 = vsel %vm1576, %v1569, %v1322
        %v1604 = vsel %vm1576, %v1571, %v1324
        %v1606 = vsel %vm1576, %v1573, %v1326
        %v1608 = vsel %vm1576, %v1575, %v1328
        %v1609 = vld [vmem:[%s233] sm:$0xf]
        %v1610 = vld [vmem:[%s233 + $0x4] sm:$0xf]
        %v1611 = vld [vmem:[%s233 + $0x8] sm:$0xf]
        %v1612 = vld [vmem:[%s233 + $0xc] sm:$0xf]
        %v1613 = vld [vmem:[%s233 + $0x10] sm:$0x3]
        %v1614 = vld [vmem:[%s236] sm:$0x1]
        %v1616 = vlaneseq
        %v1617 = vshrl.u32 %v1616, 7
        %v1618 = vsub.s32 0, %v1617
        %v1619 = vrot.slane %v1614, %v1618
        %v1626 = vunpack.c.l.b16 %v1609
        %v1627 = vunpack.c.l.b16 %v1610
        %v1628 = vunpack.c.l.b16 %v1611
        %v1629 = vunpack.c.l.b16 %v1612
        %v1630 = vunpack.c.l.b16 %v1613
        %v1631 = vpack.c.b16 %v1627, %v1626
        %v1632 = vpack.c.b16 %v1629, %v1628
        %v1633 = vpack.c.b16 %v1630, %v1630
        %vm1636 = vcmask 293888
        %v1637 = vsel %vm1636, %v1578, 0
        %v1639 = vsel %vm1636, %v1580, 0
        %v1641 = vsel %vm1636, %v1582, 0
        %v1643 = vsel %vm1636, %v1584, 0
        %v1645 = vsel %vm1636, %v1586, 0
        %v1647 = vsel %vm1636, %v1588, 0
        %v1649 = vsel %vm1636, %v1590, 0
        %v1651 = vsel %vm1636, %v1592, 0
        %v1653 = vsel %vm1636, %v1594, 0
        %v1655 = vsel %vm1636, %v1596, 0
        %v1657 = vsel %vm1636, %v1598, 0
        %v1659 = vsel %vm1636, %v1600, 0
        %v1661 = vsel %vm1636, %v1602, 0
        %v1663 = vsel %vm1636, %v1604, 0
        %v1665 = vsel %vm1636, %v1606, 0
        %v1667 = vsel %vm1636, %v1608, 0
        %vm1669 = vcmask 1041408
        %v1671 = vsel %vm1669, %v1633, 0
        %1673 = vmatprep.subr.bf16.mxu0 0
        %1674 = vmatpush1.bf16.msra.mxu0 %v1631
        %1675 = vmatprep.subr.bf16.mxu0 0
        %1676 = vmatpush1.bf16.msra.mxu0 %v1632
        %1677 = vmatprep.subr.bf16.mxu0 0
        %1678 = vmatpush1.bf16.msra.mxu0 %v1671
        %1679 = vmatprep.subr.bf16.mxu0 0
        %1680 = vmatpush1.bf16.msra.mxu0 0
        %1681 = vmatprep.subr.bf16.mxu0 0
        %1682 = vmatpush1.bf16.msra.mxu0 0
        %1683 = vmatprep.subr.bf16.mxu0 0
        %1684 = vmatpush1.bf16.msra.mxu0 0
        %1685 = vmatprep.subr.bf16.mxu0 0
        %1686 = vmatpush1.bf16.msra.mxu0 0
        %1687 = vmatprep.subr.bf16.mxu0 0
        %1688 = vmatpush1.bf16.msra.mxu0 0
        %1689 = vmatprep.subr.bf16.mxu0 0
        %1690 = vmatpush1.bf16.msra.mxu0 0
        %1691 = vmatprep.subr.bf16.mxu0 0
        %1692 = vmatpush1.bf16.msra.mxu0 0
        %1693 = vmatprep.subr.bf16.mxu0 0
        %1694 = vmatpush1.bf16.msra.mxu0 0
        %1695 = vmatprep.subr.bf16.mxu0 0
        %1696 = vmatpush1.bf16.msra.mxu0 0
        %1697 = vmatprep.subr.bf16.mxu0 0
        %1698 = vmatpush1.bf16.msra.mxu0 0
        %1699 = vmatprep.subr.bf16.mxu0 0
        %1700 = vmatpush1.bf16.msra.mxu0 0
        %1701 = vmatprep.subr.bf16.mxu0 0
        %1702 = vmatpush1.bf16.msra.mxu0 0
        %1703 = vmatprep.subr.bf16.mxu0 0
        %1704 = vmatpush1.bf16.msra.mxu0 0
        %1705 = vmatprep.mubr.bf16.mxu0 0
        %1706 = vmatmul.mubr.bf16.gmra.mrb[0].mxu0 %v1637
        %v1707 = vpop.f32.mrb[0].mxu0
        %v1708 = vadd.f32 %v1619, %v1707
        %v1709 = vpop.f32.mrb[0].mxu0
        %v1710 = vpop.f32.mrb[0].mxu0
        %v1711 = vadd.f32 %v1619, %v1710
        %v1712 = vpop.f32.mrb[0].mxu0
        %1713 = vmatprep.mubr.bf16.mxu0 0
        %1714 = vmatmul.mubr.bf16.gmra.mrb[0].mxu0 %v1639
        %v1715 = vpop.f32.mrb[0].mxu0
        %v1716 = vadd.f32 %v1619, %v1715
        %v1717 = vpop.f32.mrb[0].mxu0
        %v1718 = vpop.f32.mrb[0].mxu0
        %v1719 = vadd.f32 %v1619, %v1718
        %v1720 = vpop.f32.mrb[0].mxu0
        %1721 = vmatprep.mubr.bf16.mxu0 0
        %1722 = vmatmul.mubr.bf16.gmra.mrb[0].mxu0 %v1641
        %v1723 = vpop.f32.mrb[0].mxu0
        %v1724 = vadd.f32 %v1619, %v1723
        %v1725 = vpop.f32.mrb[0].mxu0
        %v1726 = vpop.f32.mrb[0].mxu0
        %v1727 = vadd.f32 %v1619, %v1726
        %v1728 = vpop.f32.mrb[0].mxu0
        %1729 = vmatprep.mubr.bf16.mxu0 0
        %1730 = vmatmul.mubr.bf16.gmra.mrb[0].mxu0 %v1643
        %v1731 = vpop.f32.mrb[0].mxu0
        %v1732 = vadd.f32 %v1619, %v1731
        %v1733 = vpop.f32.mrb[0].mxu0
        %v1734 = vpop.f32.mrb[0].mxu0
        %v1735 = vadd.f32 %v1619, %v1734
        %v1736 = vpop.f32.mrb[0].mxu0
        %1737 = vmatprep.mubr.bf16.mxu0 0
        %1738 = vmatmul.mubr.bf16.gmra.mrb[0].mxu0 %v1645
        %v1739 = vpop.f32.mrb[0].mxu0
        %v1740 = vadd.f32 %v1619, %v1739
        %v1741 = vpop.f32.mrb[0].mxu0
        %v1742 = vpop.f32.mrb[0].mxu0
        %v1743 = vadd.f32 %v1619, %v1742
        %v1744 = vpop.f32.mrb[0].mxu0
        %1745 = vmatprep.mubr.bf16.mxu0 0
        %1746 = vmatmul.mubr.bf16.gmra.mrb[0].mxu0 %v1647
        %v1747 = vpop.f32.mrb[0].mxu0
        %v1748 = vadd.f32 %v1619, %v1747
        %v1749 = vpop.f32.mrb[0].mxu0
        %v1750 = vpop.f32.mrb[0].mxu0
        %v1751 = vadd.f32 %v1619, %v1750
        %v1752 = vpop.f32.mrb[0].mxu0
        %1753 = vmatprep.mubr.bf16.mxu0 0
        %1754 = vmatmul.mubr.bf16.gmra.mrb[0].mxu0 %v1649
        %v1755 = vpop.f32.mrb[0].mxu0
        %v1756 = vadd.f32 %v1619, %v1755
        %v1757 = vpop.f32.mrb[0].mxu0
        %v1758 = vpop.f32.mrb[0].mxu0
        %v1759 = vadd.f32 %v1619, %v1758
        %v1760 = vpop.f32.mrb[0].mxu0
        %1761 = vmatprep.mubr.bf16.mxu0 0
        %1762 = vmatmul.mubr.bf16.gmra.mrb[0].mxu0 %v1651
        %v1763 = vpop.f32.mrb[0].mxu0
        %v1764 = vadd.f32 %v1619, %v1763
        %v1765 = vpop.f32.mrb[0].mxu0
        %v1766 = vpop.f32.mrb[0].mxu0
        %v1767 = vadd.f32 %v1619, %v1766
        %v1768 = vpop.f32.mrb[0].mxu0
        %1769 = vmatprep.mubr.bf16.mxu0 0
        %1770 = vmatmul.mubr.bf16.gmra.mrb[0].mxu0 %v1653
        %v1771 = vpop.f32.mrb[0].mxu0
        %v1772 = vadd.f32 %v1619, %v1771
        %v1773 = vpop.f32.mrb[0].mxu0
        %v1774 = vpop.f32.mrb[0].mxu0
        %v1775 = vadd.f32 %v1619, %v1774
        %v1776 = vpop.f32.mrb[0].mxu0
        %1777 = vmatprep.mubr.bf16.mxu0 0
        %1778 = vmatmul.mubr.bf16.gmra.mrb[0].mxu0 %v1655
        %v1779 = vpop.f32.mrb[0].mxu0
        %v1780 = vadd.f32 %v1619, %v1779
        %v1781 = vpop.f32.mrb[0].mxu0
        %v1782 = vpop.f32.mrb[0].mxu0
        %v1783 = vadd.f32 %v1619, %v1782
        %v1784 = vpop.f32.mrb[0].mxu0
        %1785 = vmatprep.mubr.bf16.mxu0 0
        %1786 = vmatmul.mubr.bf16.gmra.mrb[0].mxu0 %v1657
        %v1787 = vpop.f32.mrb[0].mxu0
        %v1788 = vadd.f32 %v1619, %v1787
        %v1789 = vpop.f32.mrb[0].mxu0
        %v1790 = vpop.f32.mrb[0].mxu0
        %v1791 = vadd.f32 %v1619, %v1790
        %v1792 = vpop.f32.mrb[0].mxu0
        %1793 = vmatprep.mubr.bf16.mxu0 0
        %1794 = vmatmul.mubr.bf16.gmra.mrb[0].mxu0 %v1659
        %v1795 = vpop.f32.mrb[0].mxu0
        %v1796 = vadd.f32 %v1619, %v1795
        %v1797 = vpop.f32.mrb[0].mxu0
        %v1798 = vpop.f32.mrb[0].mxu0
        %v1799 = vadd.f32 %v1619, %v1798
        %v1800 = vpop.f32.mrb[0].mxu0
        %1801 = vmatprep.mubr.bf16.mxu0 0
        %1802 = vmatmul.mubr.bf16.gmra.mrb[0].mxu0 %v1661
        %v1803 = vpop.f32.mrb[0].mxu0
        %v1804 = vadd.f32 %v1619, %v1803
        %v1805 = vpop.f32.mrb[0].mxu0
        %v1806 = vpop.f32.mrb[0].mxu0
        %v1807 = vadd.f32 %v1619, %v1806
        %v1808 = vpop.f32.mrb[0].mxu0
        %1809 = vmatprep.mubr.bf16.mxu0 0
        %1810 = vmatmul.mubr.bf16.gmra.mrb[0].mxu0 %v1663
        %v1811 = vpop.f32.mrb[0].mxu0
        %v1812 = vadd.f32 %v1619, %v1811
        %v1813 = vpop.f32.mrb[0].mxu0
        %v1814 = vpop.f32.mrb[0].mxu0
        %v1815 = vadd.f32 %v1619, %v1814
        %v1816 = vpop.f32.mrb[0].mxu0
        %1817 = vmatprep.mubr.bf16.mxu0 0
        %1818 = vmatmul.mubr.bf16.gmra.mrb[0].mxu0 %v1665
        %v1819 = vpop.f32.mrb[0].mxu0
        %v1820 = vadd.f32 %v1619, %v1819
        %v1821 = vpop.f32.mrb[0].mxu0
        %v1822 = vpop.f32.mrb[0].mxu0
        %v1823 = vadd.f32 %v1619, %v1822
        %v1824 = vpop.f32.mrb[0].mxu0
        %1825 = vmatprep.mubr.bf16.mxu0 0
        %1826 = vmatmul.mubr.bf16.gmra.mrb[0].mxu0 %v1667
        %v1827 = vpop.f32.mrb[0].mxu0
        %v1828 = vadd.f32 %v1619, %v1827
        %v1829 = vpop.f32.mrb[0].mxu0
        %v1830 = vpop.f32.mrb[0].mxu0
        %v1831 = vadd.f32 %v1619, %v1830
        %v1832 = vpop.f32.mrb[0].mxu0
        %1833 = vdwg.mxu0
        %v1834 = vsub.f32 0.0, %v1708
        %v1835 = vsub.f32 0.0, %v1711
        %v1836 = vsub.f32 0.0, %v1716
        %v1837 = vsub.f32 0.0, %v1719
        %v1838 = vsub.f32 0.0, %v1724
        %v1839 = vsub.f32 0.0, %v1727
        %v1840 = vsub.f32 0.0, %v1732
        %v1841 = vsub.f32 0.0, %v1735
        %v1842 = vsub.f32 0.0, %v1740
        %v1843 = vsub.f32 0.0, %v1743
        %v1844 = vsub.f32 0.0, %v1748
        %v1845 = vsub.f32 0.0, %v1751
        %v1846 = vsub.f32 0.0, %v1756
        %v1847 = vsub.f32 0.0, %v1759
        %v1848 = vsub.f32 0.0, %v1764
        %v1849 = vsub.f32 0.0, %v1767
        %v1850 = vsub.f32 0.0, %v1772
        %v1851 = vsub.f32 0.0, %v1775
        %v1852 = vsub.f32 0.0, %v1780
        %v1853 = vsub.f32 0.0, %v1783
        %v1854 = vsub.f32 0.0, %v1788
        %v1855 = vsub.f32 0.0, %v1791
        %v1856 = vsub.f32 0.0, %v1796
        %v1857 = vsub.f32 0.0, %v1799
        %v1858 = vsub.f32 0.0, %v1804
        %v1859 = vsub.f32 0.0, %v1807
        %v1860 = vsub.f32 0.0, %v1812
        %v1861 = vsub.f32 0.0, %v1815
        %v1862 = vsub.f32 0.0, %v1820
        %v1863 = vsub.f32 0.0, %v1823
        %v1864 = vsub.f32 0.0, %v1828
        %v1865 = vsub.f32 0.0, %v1831
        %v1866 = vmul.f32 %v1834, 1.442695
        %v1867 = vpow.pop %v1866
        %v1868 = vmul.f32 %v1835, 1.442695
        %v1869 = vpow.pop %v1868
        %v1870 = vmul.f32 %v1836, 1.442695
        %v1871 = vpow.pop %v1870
        %v1872 = vmul.f32 %v1837, 1.442695
        %v1873 = vpow.pop %v1872
        %v1874 = vmul.f32 %v1838, 1.442695
        %v1875 = vpow.pop %v1874
        %v1876 = vmul.f32 %v1839, 1.442695
        %v1877 = vpow.pop %v1876
        %v1878 = vmul.f32 %v1840, 1.442695
        %v1879 = vpow.pop %v1878
        %v1880 = vmul.f32 %v1841, 1.442695
        %v1881 = vpow.pop %v1880
        %v1882 = vmul.f32 %v1842, 1.442695
        %v1883 = vpow.pop %v1882
        %v1884 = vmul.f32 %v1843, 1.442695
        %v1885 = vpow.pop %v1884
        %v1886 = vmul.f32 %v1844, 1.442695
        %v1887 = vpow.pop %v1886
        %v1888 = vmul.f32 %v1845, 1.442695
        %v1889 = vpow.pop %v1888
        %v1890 = vmul.f32 %v1846, 1.442695
        %v1891 = vpow.pop %v1890
        %v1892 = vmul.f32 %v1847, 1.442695
        %v1893 = vpow.pop %v1892
        %v1894 = vmul.f32 %v1848, 1.442695
        %v1895 = vpow.pop %v1894
        %v1896 = vmul.f32 %v1849, 1.442695
        %v1897 = vpow.pop %v1896
        %v1898 = vmul.f32 %v1850, 1.442695
        %v1899 = vpow.pop %v1898
        %v1900 = vmul.f32 %v1851, 1.442695
        %v1901 = vpow.pop %v1900
        %v1902 = vmul.f32 %v1852, 1.442695
        %v1903 = vpow.pop %v1902
        %v1904 = vmul.f32 %v1853, 1.442695
        %v1905 = vpow.pop %v1904
        %v1906 = vmul.f32 %v1854, 1.442695
        %v1907 = vpow.pop %v1906
        %v1908 = vmul.f32 %v1855, 1.442695
        %v1909 = vpow.pop %v1908
        %v1910 = vmul.f32 %v1856, 1.442695
        %v1911 = vpow.pop %v1910
        %v1912 = vmul.f32 %v1857, 1.442695
        %v1913 = vpow.pop %v1912
        %v1914 = vmul.f32 %v1858, 1.442695
        %v1915 = vpow.pop %v1914
        %v1916 = vmul.f32 %v1859, 1.442695
        %v1917 = vpow.pop %v1916
        %v1918 = vmul.f32 %v1860, 1.442695
        %v1919 = vpow.pop %v1918
        %v1920 = vmul.f32 %v1861, 1.442695
        %v1921 = vpow.pop %v1920
        %v1922 = vmul.f32 %v1862, 1.442695
        %v1923 = vpow.pop %v1922
        %v1924 = vmul.f32 %v1863, 1.442695
        %v1925 = vpow.pop %v1924
        %v1926 = vmul.f32 %v1864, 1.442695
        %v1927 = vpow.pop %v1926
        %v1928 = vmul.f32 %v1865, 1.442695
        %v1929 = vpow.pop %v1928
        %v1930 = vadd.f32 %v1867, 1.0
        %v1931 = vadd.f32 %v1869, 1.0
        %v1932 = vadd.f32 %v1871, 1.0
        %v1933 = vadd.f32 %v1873, 1.0
        %v1934 = vadd.f32 %v1875, 1.0
        %v1935 = vadd.f32 %v1877, 1.0
        %v1936 = vadd.f32 %v1879, 1.0
        %v1937 = vadd.f32 %v1881, 1.0
        %v1938 = vadd.f32 %v1883, 1.0
        %v1939 = vadd.f32 %v1885, 1.0
        %v1940 = vadd.f32 %v1887, 1.0
        %v1941 = vadd.f32 %v1889, 1.0
        %v1942 = vadd.f32 %v1891, 1.0
        %v1943 = vadd.f32 %v1893, 1.0
        %v1944 = vadd.f32 %v1895, 1.0
        %v1945 = vadd.f32 %v1897, 1.0
        %v1946 = vadd.f32 %v1899, 1.0
        %v1947 = vadd.f32 %v1901, 1.0
        %v1948 = vadd.f32 %v1903, 1.0
        %v1949 = vadd.f32 %v1905, 1.0
        %v1950 = vadd.f32 %v1907, 1.0
        %v1951 = vadd.f32 %v1909, 1.0
        %v1952 = vadd.f32 %v1911, 1.0
        %v1953 = vadd.f32 %v1913, 1.0
        %v1954 = vadd.f32 %v1915, 1.0
        %v1955 = vadd.f32 %v1917, 1.0
        %v1956 = vadd.f32 %v1919, 1.0
        %v1957 = vadd.f32 %v1921, 1.0
        %v1958 = vadd.f32 %v1923, 1.0
        %v1959 = vadd.f32 %v1925, 1.0
        %v1960 = vadd.f32 %v1927, 1.0
        %v1961 = vadd.f32 %v1929, 1.0
        %v1962 = vrcp.pop %v1930
        %v1963 = vrcp.pop %v1931
        %v1964 = vrcp.pop %v1932
        %v1965 = vrcp.pop %v1933
        %v1966 = vrcp.pop %v1934
        %v1967 = vrcp.pop %v1935
        %v1968 = vrcp.pop %v1936
        %v1969 = vrcp.pop %v1937
        %v1970 = vrcp.pop %v1938
        %v1971 = vrcp.pop %v1939
        %v1972 = vrcp.pop %v1940
        %v1973 = vrcp.pop %v1941
        %v1974 = vrcp.pop %v1942
        %v1975 = vrcp.pop %v1943
        %v1976 = vrcp.pop %v1944
        %v1977 = vrcp.pop %v1945
        %v1978 = vrcp.pop %v1946
        %v1979 = vrcp.pop %v1947
        %v1980 = vrcp.pop %v1948
        %v1981 = vrcp.pop %v1949
        %v1982 = vrcp.pop %v1950
        %v1983 = vrcp.pop %v1951
        %v1984 = vrcp.pop %v1952
        %v1985 = vrcp.pop %v1953
        %v1986 = vrcp.pop %v1954
        %v1987 = vrcp.pop %v1955
        %v1988 = vrcp.pop %v1956
        %v1989 = vrcp.pop %v1957
        %v1990 = vrcp.pop %v1958
        %v1991 = vrcp.pop %v1959
        %v1992 = vrcp.pop %v1960
        %v1993 = vrcp.pop %v1961
        %v1994 = vmul.f32 %v1708, %v1962
        %v1995 = vmul.f32 %v1711, %v1963
        %v1996 = vmul.f32 %v1716, %v1964
        %v1997 = vmul.f32 %v1719, %v1965
        %v1998 = vmul.f32 %v1724, %v1966
        %v1999 = vmul.f32 %v1727, %v1967
        %v2000 = vmul.f32 %v1732, %v1968
        %v2001 = vmul.f32 %v1735, %v1969
        %v2002 = vmul.f32 %v1740, %v1970
        %v2003 = vmul.f32 %v1743, %v1971
        %v2004 = vmul.f32 %v1748, %v1972
        %v2005 = vmul.f32 %v1751, %v1973
        %v2006 = vmul.f32 %v1756, %v1974
        %v2007 = vmul.f32 %v1759, %v1975
        %v2008 = vmul.f32 %v1764, %v1976
        %v2009 = vmul.f32 %v1767, %v1977
        %v2010 = vmul.f32 %v1772, %v1978
        %v2011 = vmul.f32 %v1775, %v1979
        %v2012 = vmul.f32 %v1780, %v1980
        %v2013 = vmul.f32 %v1783, %v1981
        %v2014 = vmul.f32 %v1788, %v1982
        %v2015 = vmul.f32 %v1791, %v1983
        %v2016 = vmul.f32 %v1796, %v1984
        %v2017 = vmul.f32 %v1799, %v1985
        %v2018 = vmul.f32 %v1804, %v1986
        %v2019 = vmul.f32 %v1807, %v1987
        %v2020 = vmul.f32 %v1812, %v1988
        %v2021 = vmul.f32 %v1815, %v1989
        %v2022 = vmul.f32 %v1820, %v1990
        %v2023 = vmul.f32 %v1823, %v1991
        %v2024 = vmul.f32 %v1828, %v1992
        %v2025 = vmul.f32 %v1831, %v1993
        %v2026 = vpack.c.bf16 %v1995, %v1994
        %v2027 = vpack.c.bf16 %v1997, %v1996
        %v2028 = vpack.c.bf16 %v1999, %v1998
        %v2029 = vpack.c.bf16 %v2001, %v2000
        %v2030 = vpack.c.bf16 %v2003, %v2002
        %v2031 = vpack.c.bf16 %v2005, %v2004
        %v2032 = vpack.c.bf16 %v2007, %v2006
        %v2033 = vpack.c.bf16 %v2009, %v2008
        %v2034 = vpack.c.bf16 %v2011, %v2010
        %v2035 = vpack.c.bf16 %v2013, %v2012
        %v2036 = vpack.c.bf16 %v2015, %v2014
        %v2037 = vpack.c.bf16 %v2017, %v2016
        %v2038 = vpack.c.bf16 %v2019, %v2018
        %v2039 = vpack.c.bf16 %v2021, %v2020
        %v2040 = vpack.c.bf16 %v2023, %v2022
        %v2041 = vpack.c.bf16 %v2025, %v2024
        %v2058 = vunpack.c.l.b16 %v2026
        %v2059 = vunpack.c.h.b16 %v2026
        %v2060 = vunpack.c.l.b16 %v2027
        %v2061 = vunpack.c.h.b16 %v2027
        %v2062 = vunpack.c.l.b16 %v2028
        %v2063 = vunpack.c.h.b16 %v2028
        %v2064 = vunpack.c.l.b16 %v2029
        %v2065 = vunpack.c.h.b16 %v2029
        %v2066 = vunpack.c.l.b16 %v2030
        %v2067 = vunpack.c.h.b16 %v2030
        %v2068 = vunpack.c.l.b16 %v2031
        %v2069 = vunpack.c.h.b16 %v2031
        %v2070 = vunpack.c.l.b16 %v2032
        %v2071 = vunpack.c.h.b16 %v2032
        %v2072 = vunpack.c.l.b16 %v2033
        %v2073 = vunpack.c.h.b16 %v2033
        %v2074 = vunpack.c.l.b16 %v2034
        %v2075 = vunpack.c.h.b16 %v2034
        %v2076 = vunpack.c.l.b16 %v2035
        %v2077 = vunpack.c.h.b16 %v2035
        %v2078 = vunpack.c.l.b16 %v2036
        %v2079 = vunpack.c.h.b16 %v2036
        %v2080 = vunpack.c.l.b16 %v2037
        %v2081 = vunpack.c.h.b16 %v2037
        %v2082 = vunpack.c.l.b16 %v2038
        %v2083 = vunpack.c.h.b16 %v2038
        %v2084 = vunpack.c.l.b16 %v2039
        %v2085 = vunpack.c.h.b16 %v2039
        %v2086 = vunpack.c.l.b16 %v2040
        %v2087 = vunpack.c.h.b16 %v2040
        %v2088 = vunpack.c.l.b16 %v2041
        %v2089 = vunpack.c.h.b16 %v2041
        %v2090 = vpack.c.b16 %v2058, %v2058
        %v2091 = vpack.c.b16 %v2059, %v2059
        %v2092 = vpack.c.b16 %v2060, %v2060
        %v2093 = vpack.c.b16 %v2061, %v2061
        %v2094 = vpack.c.b16 %v2062, %v2062
        %v2095 = vpack.c.b16 %v2063, %v2063
        %v2096 = vpack.c.b16 %v2064, %v2064
        %v2097 = vpack.c.b16 %v2065, %v2065
        %v2098 = vpack.c.b16 %v2066, %v2066
        %v2099 = vpack.c.b16 %v2067, %v2067
        %v2100 = vpack.c.b16 %v2068, %v2068
        %v2101 = vpack.c.b16 %v2069, %v2069
        %v2102 = vpack.c.b16 %v2070, %v2070
        %v2103 = vpack.c.b16 %v2071, %v2071
        %v2104 = vpack.c.b16 %v2072, %v2072
        %v2105 = vpack.c.b16 %v2073, %v2073
        %v2106 = vpack.c.b16 %v2074, %v2074
        %v2107 = vpack.c.b16 %v2075, %v2075
        %v2108 = vpack.c.b16 %v2076, %v2076
        %v2109 = vpack.c.b16 %v2077, %v2077
        %v2110 = vpack.c.b16 %v2078, %v2078
        %v2111 = vpack.c.b16 %v2079, %v2079
        %v2112 = vpack.c.b16 %v2080, %v2080
        %v2113 = vpack.c.b16 %v2081, %v2081
        %v2114 = vpack.c.b16 %v2082, %v2082
        %v2115 = vpack.c.b16 %v2083, %v2083
        %v2116 = vpack.c.b16 %v2084, %v2084
        %v2117 = vpack.c.b16 %v2085, %v2085
        %v2118 = vpack.c.b16 %v2086, %v2086
        %v2119 = vpack.c.b16 %v2087, %v2087
        %v2120 = vpack.c.b16 %v2088, %v2088
        %v2121 = vpack.c.b16 %v2089, %v2089
        %2154 = vst [vmem:[%s220] sm:$0xf] %v2090
        %2155 = vst [vmem:[%s220 + $0x4] sm:$0xf] %v2091
        %2156 = vst [vmem:[%s220 + $0x8] sm:$0xf] %v2092
        %2157 = vst [vmem:[%s220 + $0xc] sm:$0xf] %v2093
        %2158 = vst [vmem:[%s220 + $0x10] sm:$0xf] %v2094
        %2159 = vst [vmem:[%s220 + $0x14] sm:$0xf] %v2095
        %2160 = vst [vmem:[%s220 + $0x18] sm:$0xf] %v2096
        %2161 = vst [vmem:[%s220 + $0x1c] sm:$0xf] %v2097
        %2162 = vst [vmem:[%s220 + $0x20] sm:$0xf] %v2098
        %2163 = vst [vmem:[%s220 + $0x24] sm:$0xf] %v2099
        %2164 = vst [vmem:[%s220 + $0x28] sm:$0xf] %v2100
        %2165 = vst [vmem:[%s220 + $0x2c] sm:$0xf] %v2101
        %2166 = vst [vmem:[%s220 + $0x30] sm:$0xf] %v2102
        %2167 = vst [vmem:[%s220 + $0x34] sm:$0xf] %v2103
        %2168 = vst [vmem:[%s220 + $0x38] sm:$0xf] %v2104
        %2169 = vst [vmem:[%s220 + $0x3c] sm:$0xf] %v2105
        %2170 = vst [vmem:[%s220 + $0x40] sm:$0xf] %v2106
        %2171 = vst [vmem:[%s220 + $0x44] sm:$0xf] %v2107
        %2172 = vst [vmem:[%s220 + $0x48] sm:$0xf] %v2108
        %2173 = vst [vmem:[%s220 + $0x4c] sm:$0xf] %v2109
        %2174 = vst [vmem:[%s220 + $0x50] sm:$0xf] %v2110
        %2175 = vst [vmem:[%s220 + $0x54] sm:$0xf] %v2111
        %2176 = vst [vmem:[%s220 + $0x58] sm:$0xf] %v2112
        %2177 = vst [vmem:[%s220 + $0x5c] sm:$0xf] %v2113
        %2178 = vst [vmem:[%s220 + $0x60] sm:$0xf] %v2114
        %2179 = vst [vmem:[%s220 + $0x64] sm:$0xf] %v2115
        %2180 = vst [vmem:[%s220 + $0x68] sm:$0xf] %v2116
        %2181 = vst [vmem:[%s220 + $0x6c] sm:$0xf] %v2117
        %2182 = vst [vmem:[%s220 + $0x70] sm:$0xf] %v2118
        %2183 = vst [vmem:[%s220 + $0x74] sm:$0xf] %v2119
        %2184 = vst [vmem:[%s220 + $0x78] sm:$0xf] %v2120
        %2185 = vst [vmem:[%s220 + $0x7c] sm:$0xf] %v2121
        %s2186 = sand.u32 %s128, 1
        %s2187 = scalar_lea.sflag [#allocation3], %s2186
        %s2188 = sand.u32 %s128, 1
        %s2189 = smul.addr %s2188, 128
        %s2190 = scalar_lea.vmem [#allocation2], %s2189
        // Predicated region
        $region33: #{tpu_custom_call.1} parent=31 // pred_check
          %p2191 = pneg %p138
        $region34: #{tpu_custom_call.1} parent=31 // pred_check_branch
          %2193 = sbr.rel (%p2191) target = $region36
        $region35: #{tpu_custom_call.1} parent=31 // pred_region
          %s2194 = smul.u32 16, %s23
          %s2196 = ssub.s32 2048, 2048
          %2197 = vsyncadd %s2187, %s2196
          %s2198 = smul.addr %s2194, 2
          %s2199 = sadd.s32 %s24, %s2198
          %s2200 = smul.addr %s22, 32
          %s2201 = sadd.s32 %s2199, %s2200
          %s2202 = smul.addr %s2201, 64
          %s2203 = scalar_lea.hbm %s3, %s2202
          %s2204 = sshll.u32 %s2190, 4
          %s2205 = int_to_ptr.vmem [resolvable:$true] %s2204
          %2210 = dma.vmem_to_hbm [thread:$0]  %s2205, 2048, %s2203, %s2187, 64, 64, 4
        $region36: #{tpu_custom_call.1} parent=31 // pred_fallthru
          _
      $region32: #{tpu_custom_call.1} parent=5 // pred_fallthru
        _
      %p2211 = scmp.le.s32.totalorder 2, %s12
      // Predicated region
      $region37: #{tpu_custom_call.1} parent=5 // pred_check
        %p2212 = pneg %p2211
      $region38: #{tpu_custom_call.1} parent=5 // pred_check_branch
        %2214 = sbr.rel (%p2212) target = $region40
      $region39: #{tpu_custom_call.1} parent=5 // pred_region
        %s2215 = ssub.s32 %s12, 2
        // Predicated region
        $region41: #{tpu_custom_call.1} parent=39 // pred_check
          %p2216 = pneg %p144
        $region42: #{tpu_custom_call.1} parent=39 // pred_check_branch
          %2218 = sbr.rel (%p2216) target = $region44
        $region43: #{tpu_custom_call.1} parent=39 // pred_region
          %s2219 = sand.u32 %s129, 1
          %s2220 = scalar_lea.sflag [#allocation3], %s2219
          %s2221 = sand.u32 %s129, 1
          %s2222 = smul.addr %s2221, 128
          %s2223 = scalar_lea.vmem [#allocation2], %s2222
          %2224 = dma.done %s2220, 2048
        $region44: #{tpu_custom_call.1} parent=39 // pred_fallthru
          _
      $region40: #{tpu_custom_call.1} parent=5 // pred_fallthru
        _
    $region6: #{tpu_custom_call.1} parent=1 // loop_footer
      %s16 = sadd.s32 1, %s12
    $region7: #{tpu_custom_call.1} parent=1 // loop_footer_branch
      %11 = sbr.rel target = $region3
    $region8: #{tpu_custom_call.1} parent=1 // loop_exit
      _
    %2225 = vsyncpa [#allocation3], 1
    %s2226 = scalar_lea.sflag [#allocation3], 1
    %2227 = vsyncpa %s2226, 1

</llo_original>
